<compile_context>
chip_gen: v5e
topology: v5e:2x2
jax: 0.10.0
libtpu: 0.0.40
codegen_flags: <defaults>
</compile_context>

<pallas_src>
import functools

import jax
import jax.numpy as jnp
from jax.experimental import pallas as pl
from jax.experimental.pallas import tpu as pltpu


def _round_up(x, m):
    return (x + m - 1) // m * m


def _pick_row_tile(h_out, w_out, target_m=512):
    """Pick output-row tile th (divisor of h_out) so that M = th*w_out is a
    multiple of 8 and close to (but not above) target_m; fall back to the whole
    image (block == full extent, always legal)."""
    cands = [th for th in range(1, h_out + 1)
             if h_out % th == 0 and (th * w_out) % 8 == 0]
    fitting = [th for th in cands if th * w_out <= target_m]
    if fitting:
        return max(fitting)
    if cands:
        return min(cands)
    return h_out


def _block_kernel(x_ref, dw_ref, b1_ref, pw_ref, b2_ref, o_ref, *, stride, th, w_out):
    """One (batch, output-row-tile) grid step.

    x_ref : (H+2, Wpad, Cin_p)   spatially pre-padded NHWC image (resident per batch)
    dw_ref: (3, 3, Cin_p)        depthwise 3x3 weights, BN1 scale folded, f32
    b1_ref: (1, Cin_p)           folded BN1 bias, f32
    pw_ref: (Cin_p, Cout_p)      pointwise (1x1) weights, BN2 scale folded, bf16
    b2_ref: (1, Cout_p)          folded BN2 bias, f32
    o_ref : (TM, Cout_p)         flattened output tile, TM = th * w_out
    """
    t = pl.program_id(1)
    cin_p = x_ref.shape[-1]
    tm, cout_p = o_ref.shape

    # Rows of the padded image needed by this output-row tile.
    row_span = (th - 1) * stride + 3
    row0 = pl.multiple_of(t * (th * stride), th * stride)
    xt = x_ref[pl.ds(row0, row_span), :, :].astype(jnp.float32)   # (row_span, Wpad, Cin_p)

    # Depthwise 3x3 conv as 9 shifted multiply-accumulates on the VPU (BN1 scale
    # already folded into dw).  Accumulator seeded with the first tap product.
    # TODO(synk): kw in {1,2} is a sublane-shifted read; if bundle dumps show
    # realignment copies, produce the shifts with pltpu.roll along W (XLU slot).
    # TODO(synk): stride=2 relies on strided slicing along the sublane (W) axis;
    # validate lowering/perf before using (test below runs stride=1).
    dw = dw_ref[...].astype(jnp.float32)
    hi = (th - 1) * stride + 1
    wi = (w_out - 1) * stride + 1
    acc = None
    for kh in range(3):
        for kw in range(3):
            patch = xt[kh:kh + hi:stride, kw:kw + wi:stride, :]
            term = patch * dw[kh, kw, :]
            acc = term if acc is None else acc + term

    # BN1 bias + ReLU (scale folded into dw).
    h1 = jnp.maximum(acc + b1_ref[...], 0.0)                       # (th, w_out, Cin_p)

    # Pointwise 1x1 conv as a single 2-D MXU matmul with bf16 operands and f32
    # accumulation: (TM, Cin_p) x (Cin_p, Cout_p).
    h1_2d = h1.reshape(tm, cin_p).astype(jnp.bfloat16)
    out = jnp.dot(h1_2d, pw_ref[...], preferred_element_type=jnp.float32)
    out = jnp.maximum(out + b2_ref[...], 0.0)                      # (TM, Cout_p)

    o_ref[...] = out.astype(o_ref.dtype)


def block_forward(x_nchw, dw_w, bn1, pw_w, bn2, *, stride=1):
    """x_nchw: (N, Cin, H, W). dw_w: (Cin,1,3,3). pw_w: (Cout,Cin,1,1).
    bn1/bn2: dict(gamma, beta, mean, var), eval-mode. Returns (N, Cout, Hout, Wout)."""
    eps = 1e-5
    n, cin, h, w = x_nchw.shape
    cout = pw_w.shape[0]
    h_out = (h + 2 - 3) // stride + 1
    w_out = (w + 2 - 3) // stride + 1

    lane = 128
    cin_p = _round_up(cin, lane)
    cout_p = _round_up(cout, lane)
    w_pad = _round_up(w + 2, 8)          # sublane-aligned padded width

    # NCHW -> NHWC with the 1-pixel spatial pad, sublane width pad and 128-lane
    # channel pad all fused into the same layout transform (no extra HBM pass,
    # no VMEM scratch; zero channels/pixels flow through as exact zeros).
    # TODO(synk): in an end-to-end NHWC model these boundary transposes (and the
    # final slice/transpose below) disappear into neighbouring layers.
    x_nhwc = jnp.transpose(x_nchw, (0, 2, 3, 1))
    x_pad = jnp.pad(x_nhwc, ((0, 0), (1, 1), (1, w_pad - w - 1), (0, cin_p - cin)))

    # Fold eval-mode BatchNorm into conv-weight scale + bias (exact constant fold).
    s1 = bn1['gamma'] / jnp.sqrt(bn1['var'] + eps)                  # (Cin,)
    b1 = bn1['beta'] - bn1['mean'] * s1
    s2 = bn2['gamma'] / jnp.sqrt(bn2['var'] + eps)                  # (Cout,)
    b2 = bn2['beta'] - bn2['mean'] * s2

    dw_k = jnp.transpose(dw_w[:, 0], (1, 2, 0)) * s1                # (3, 3, Cin)  f32
    pw_k = jnp.transpose(pw_w[:, :, 0, 0], (1, 0)) * s2[None, :]    # (Cin, Cout)  f32

    dw_k = jnp.pad(dw_k, ((0, 0), (0, 0), (0, cin_p - cin)))
    pw_k = jnp.pad(pw_k, ((0, cin_p - cin), (0, cout_p - cout))).astype(jnp.bfloat16)
    b1_k = jnp.pad(b1, (0, cin_p - cin)).reshape(1, cin_p)
    b2_k = jnp.pad(b2, (0, cout_p - cout)).reshape(1, cout_p)

    th = _pick_row_tile(h_out, w_out)
    n_row_tiles = h_out // th
    tm = th * w_out

    # VMEM budget: double-buffered blocks + headroom for in-kernel intermediates.
    itemsize = x_nchw.dtype.itemsize
    block_bytes = (
        2 * (h + 2) * w_pad * cin_p * itemsize                              # input
        + 2 * tm * cout_p * itemsize                                        # output
        + 2 * (9 * cin_p * 4 + cin_p * cout_p * 2 + (cin_p + cout_p) * 4)   # weights
        + 4 * tm * cin_p * 4                                                # acc/h1
    )
    vmem_limit = int(max(32 * 1024 * 1024, 2 * block_bytes))

    kernel = functools.partial(_block_kernel, stride=stride, th=th, w_out=w_out)

    out_flat = pl.pallas_call(
        kernel,
        out_shape=jax.ShapeDtypeStruct((n, h_out * w_out, cout_p), x_nchw.dtype),
        grid_spec=pltpu.PrefetchScalarGridSpec(
            num_scalar_prefetch=0,
            grid=(n, n_row_tiles),
            in_specs=[
                # Pre-padded image: constant block index across the row-tile axis,
                # so it is DMA'd once per batch element and stays resident in VMEM.
                pl.BlockSpec((None, h + 2, w_pad, cin_p), lambda b, t: (b, 0, 0, 0)),
                pl.BlockSpec((3, 3, cin_p), lambda b, t: (0, 0, 0)),
                pl.BlockSpec((1, cin_p), lambda b, t: (0, 0)),
                pl.BlockSpec((cin_p, cout_p), lambda b, t: (0, 0)),
                pl.BlockSpec((1, cout_p), lambda b, t: (0, 0)),
            ],
            out_specs=pl.BlockSpec((None, tm, cout_p), lambda b, t: (b, t, 0)),
        ),
        compiler_params=pltpu.CompilerParams(
            # No cross-step scratch state anymore: both grid axes are parallel
            # (megacore / v7x 2-TC sharding even at batch=1).
            dimension_semantics=("parallel", "parallel"),
            vmem_limit_bytes=vmem_limit,
        ),
    )(x_pad, dw_k, b1_k, pw_k, b2_k)

    # Drop channel padding, restore spatial shape, NHWC -> NCHW to match PyTorch.
    out = out_flat.reshape(n, h_out, w_out, cout_p)[:, :, :, :cout]
    return jnp.transpose(out, (0, 3, 1, 2))


def _reference(x_nchw, dw_w, bn1, pw_w, bn2, *, stride=1):
    """Pure-JAX reference matching PyTorch eval-mode forward."""
    eps = 1e-5
    cin = x_nchw.shape[1]
    y = jax.lax.conv_general_dilated(
        x_nchw, dw_w, window_strides=(stride, stride),
        padding=((1, 1), (1, 1)), feature_group_count=cin,
        dimension_numbers=('NCHW', 'OIHW', 'NCHW'))
    y = (y - bn1['mean'][None, :, None, None]) / jnp.sqrt(bn1['var'] + eps)[None, :, None, None]
    y = y * bn1['gamma'][None, :, None, None] + bn1['beta'][None, :, None, None]
    y = jnp.maximum(y, 0.0)
    y = jax.lax.conv_general_dilated(
        y, pw_w, window_strides=(1, 1), padding=((0, 0), (0, 0)),
        dimension_numbers=('NCHW', 'OIHW', 'NCHW'))
    y = (y - bn2['mean'][None, :, None, None]) / jnp.sqrt(bn2['var'] + eps)[None, :, None, None]
    y = y * bn2['gamma'][None, :, None, None] + bn2['beta'][None, :, None, None]
    return jnp.maximum(y, 0.0)


if __name__ == "__main__":
    key = jax.random.PRNGKey(0)
    k_x, k_dw, k_pw = jax.random.split(key, 3)

    N, Cin, Cout, H, W, stride = 2, 4, 8, 16, 16, 1

    x = jax.random.normal(k_x, (N, Cin, H, W), jnp.float32)
    dw_w = jax.random.normal(k_dw, (Cin, 1, 3, 3), jnp.float32) * 0.5
    pw_w = jax.random.normal(k_pw, (Cout, Cin, 1, 1), jnp.float32) * 0.5

    bn1 = dict(gamma=1.0 + 0.1 * jnp.arange(Cin, dtype=jnp.float32),
               beta=0.05 * jnp.arange(Cin, dtype=jnp.float32),
               mean=0.02 * jnp.arange(Cin, dtype=jnp.float32),
               var=1.0 + 0.03 * jnp.arange(Cin, dtype=jnp.float32))
    bn2 = dict(gamma=1.0 - 0.05 * jnp.arange(Cout, dtype=jnp.float32),
               beta=-0.02 * jnp.arange(Cout, dtype=jnp.float32),
               mean=0.01 * jnp.arange(Cout, dtype=jnp.float32),
               var=1.0 + 0.02 * jnp.arange(Cout, dtype=jnp.float32))

    out = block_forward(x, dw_w, bn1, pw_w, bn2, stride=stride)
    out = jax.block_until_ready(out)

    ref = jax.block_until_ready(_reference(x, dw_w, bn1, pw_w, bn2, stride=stride))
    assert out.shape == ref.shape == (N, Cout, H // stride, W // stride)
    # Tolerance sized for bf16 MXU operands (f32 accumulation) on the 1x1 conv.
    assert jnp.allclose(out, ref, atol=5e-2, rtol=5e-2), "mismatch vs reference"

    print("KERNEL_OK")
</pallas_src>

<mosaic_0001>
module attributes {stable_mosaic.version = 11 : i64} {
  func.func @_block_kernel(%arg0: i32, %arg1: i32, %arg2: memref<1x18x24x128xf32, #tpu.memory_space<vmem>>, %arg3: memref<3x3x128xf32, #tpu.memory_space<vmem>>, %arg4: memref<1x128xf32, #tpu.memory_space<vmem>>, %arg5: memref<128x128xbf16, #tpu.memory_space<vmem>>, %arg6: memref<1x128xf32, #tpu.memory_space<vmem>>, %arg7: memref<1x256x128xf32, #tpu.memory_space<vmem>>) attributes {dimension_semantics = [#tpu.dimension_semantics<parallel>, #tpu.dimension_semantics<parallel>], iteration_bounds = array<i64: 2, 1>, scalar_prefetch = 0 : i64, scratch_operands = 0 : i64, tpu.core_type = #tpu.core_type<tc>, window_params = [{transform_indices = @transform_0, window_bounds = array<i64: 1, 18, 24, 128>}, {pipeline_mode = #tpu.pipeline_mode<synchronous>, transform_indices = @transform_1, window_bounds = array<i64: 3, 3, 128>}, {pipeline_mode = #tpu.pipeline_mode<synchronous>, transform_indices = @transform_2, window_bounds = array<i64: 1, 128>}, {pipeline_mode = #tpu.pipeline_mode<synchronous>, transform_indices = @transform_3, window_bounds = array<i64: 128, 128>}, {pipeline_mode = #tpu.pipeline_mode<synchronous>, transform_indices = @transform_4, window_bounds = array<i64: 1, 128>}, {transform_indices = @transform_5, window_bounds = array<i64: 1, 256, 128>}]} {
    %c16_i32 = arith.constant 16 : i32
    %0 = arith.muli %arg1, %c16_i32 : i32
    %1 = tpu.assume_multiple %0, 16 : i32
    %c0 = arith.constant 0 : index
    %2 = arith.index_cast %1 : i32 to index
    %c0_0 = arith.constant 0 : index
    %c0_1 = arith.constant 0 : index
    %3 = vector.load %arg2[%c0, %2, %c0_0, %c0_1] : memref<1x18x24x128xf32, #tpu.memory_space<vmem>>, vector<1x18x24x128xf32>
    %4 = vector.shape_cast %3 : vector<1x18x24x128xf32> to vector<18x24x128xf32>
    %c0_2 = arith.constant 0 : index
    %c0_3 = arith.constant 0 : index
    %c0_4 = arith.constant 0 : index
    %5 = vector.load %arg3[%c0_2, %c0_3, %c0_4] : memref<3x3x128xf32, #tpu.memory_space<vmem>>, vector<3x3x128xf32>
    %6 = vector.extract_strided_slice %4 {offsets = [0, 0, 0], sizes = [16, 16, 128], strides = [1, 1, 1]} : vector<18x24x128xf32> to vector<16x16x128xf32>
    %7 = vector.extract_strided_slice %5 {offsets = [0, 0, 0], sizes = [1, 1, 128], strides = [1, 1, 1]} : vector<3x3x128xf32> to vector<1x1x128xf32>
    %8 = vector.shape_cast %7 : vector<1x1x128xf32> to vector<128xf32>
    %9 = vector.shape_cast %8 : vector<128xf32> to vector<1x1x128xf32>
    %10 = vector.broadcast %9 : vector<1x1x128xf32> to vector<16x16x128xf32>
    %11 = arith.mulf %6, %10 : vector<16x16x128xf32>
    %12 = vector.extract_strided_slice %4 {offsets = [0, 1, 0], sizes = [16, 16, 128], strides = [1, 1, 1]} : vector<18x24x128xf32> to vector<16x16x128xf32>
    %13 = vector.extract_strided_slice %5 {offsets = [0, 1, 0], sizes = [1, 1, 128], strides = [1, 1, 1]} : vector<3x3x128xf32> to vector<1x1x128xf32>
    %14 = vector.shape_cast %13 : vector<1x1x128xf32> to vector<128xf32>
    %15 = vector.shape_cast %14 : vector<128xf32> to vector<1x1x128xf32>
    %16 = vector.broadcast %15 : vector<1x1x128xf32> to vector<16x16x128xf32>
    %17 = arith.mulf %12, %16 : vector<16x16x128xf32>
    %18 = arith.addf %11, %17 : vector<16x16x128xf32>
    %19 = vector.extract_strided_slice %4 {offsets = [0, 2, 0], sizes = [16, 16, 128], strides = [1, 1, 1]} : vector<18x24x128xf32> to vector<16x16x128xf32>
    %20 = vector.extract_strided_slice %5 {offsets = [0, 2, 0], sizes = [1, 1, 128], strides = [1, 1, 1]} : vector<3x3x128xf32> to vector<1x1x128xf32>
    %21 = vector.shape_cast %20 : vector<1x1x128xf32> to vector<128xf32>
    %22 = vector.shape_cast %21 : vector<128xf32> to vector<1x1x128xf32>
    %23 = vector.broadcast %22 : vector<1x1x128xf32> to vector<16x16x128xf32>
    %24 = arith.mulf %19, %23 : vector<16x16x128xf32>
    %25 = arith.addf %18, %24 : vector<16x16x128xf32>
    %26 = vector.extract_strided_slice %4 {offsets = [1, 0, 0], sizes = [16, 16, 128], strides = [1, 1, 1]} : vector<18x24x128xf32> to vector<16x16x128xf32>
    %27 = vector.extract_strided_slice %5 {offsets = [1, 0, 0], sizes = [1, 1, 128], strides = [1, 1, 1]} : vector<3x3x128xf32> to vector<1x1x128xf32>
    %28 = vector.shape_cast %27 : vector<1x1x128xf32> to vector<128xf32>
    %29 = vector.shape_cast %28 : vector<128xf32> to vector<1x1x128xf32>
    %30 = vector.broadcast %29 : vector<1x1x128xf32> to vector<16x16x128xf32>
    %31 = arith.mulf %26, %30 : vector<16x16x128xf32>
    %32 = arith.addf %25, %31 : vector<16x16x128xf32>
    %33 = vector.extract_strided_slice %4 {offsets = [1, 1, 0], sizes = [16, 16, 128], strides = [1, 1, 1]} : vector<18x24x128xf32> to vector<16x16x128xf32>
    %34 = vector.extract_strided_slice %5 {offsets = [1, 1, 0], sizes = [1, 1, 128], strides = [1, 1, 1]} : vector<3x3x128xf32> to vector<1x1x128xf32>
    %35 = vector.shape_cast %34 : vector<1x1x128xf32> to vector<128xf32>
    %36 = vector.shape_cast %35 : vector<128xf32> to vector<1x1x128xf32>
    %37 = vector.broadcast %36 : vector<1x1x128xf32> to vector<16x16x128xf32>
    %38 = arith.mulf %33, %37 : vector<16x16x128xf32>
    %39 = arith.addf %32, %38 : vector<16x16x128xf32>
    %40 = vector.extract_strided_slice %4 {offsets = [1, 2, 0], sizes = [16, 16, 128], strides = [1, 1, 1]} : vector<18x24x128xf32> to vector<16x16x128xf32>
    %41 = vector.extract_strided_slice %5 {offsets = [1, 2, 0], sizes = [1, 1, 128], strides = [1, 1, 1]} : vector<3x3x128xf32> to vector<1x1x128xf32>
    %42 = vector.shape_cast %41 : vector<1x1x128xf32> to vector<128xf32>
    %43 = vector.shape_cast %42 : vector<128xf32> to vector<1x1x128xf32>
    %44 = vector.broadcast %43 : vector<1x1x128xf32> to vector<16x16x128xf32>
    %45 = arith.mulf %40, %44 : vector<16x16x128xf32>
    %46 = arith.addf %39, %45 : vector<16x16x128xf32>
    %47 = vector.extract_strided_slice %4 {offsets = [2, 0, 0], sizes = [16, 16, 128], strides = [1, 1, 1]} : vector<18x24x128xf32> to vector<16x16x128xf32>
    %48 = vector.extract_strided_slice %5 {offsets = [2, 0, 0], sizes = [1, 1, 128], strides = [1, 1, 1]} : vector<3x3x128xf32> to vector<1x1x128xf32>
    %49 = vector.shape_cast %48 : vector<1x1x128xf32> to vector<128xf32>
    %50 = vector.shape_cast %49 : vector<128xf32> to vector<1x1x128xf32>
    %51 = vector.broadcast %50 : vector<1x1x128xf32> to vector<16x16x128xf32>
    %52 = arith.mulf %47, %51 : vector<16x16x128xf32>
    %53 = arith.addf %46, %52 : vector<16x16x128xf32>
    %54 = vector.extract_strided_slice %4 {offsets = [2, 1, 0], sizes = [16, 16, 128], strides = [1, 1, 1]} : vector<18x24x128xf32> to vector<16x16x128xf32>
    %55 = vector.extract_strided_slice %5 {offsets = [2, 1, 0], sizes = [1, 1, 128], strides = [1, 1, 1]} : vector<3x3x128xf32> to vector<1x1x128xf32>
    %56 = vector.shape_cast %55 : vector<1x1x128xf32> to vector<128xf32>
    %57 = vector.shape_cast %56 : vector<128xf32> to vector<1x1x128xf32>
    %58 = vector.broadcast %57 : vector<1x1x128xf32> to vector<16x16x128xf32>
    %59 = arith.mulf %54, %58 : vector<16x16x128xf32>
    %60 = arith.addf %53, %59 : vector<16x16x128xf32>
    %61 = vector.extract_strided_slice %4 {offsets = [2, 2, 0], sizes = [16, 16, 128], strides = [1, 1, 1]} : vector<18x24x128xf32> to vector<16x16x128xf32>
    %62 = vector.extract_strided_slice %5 {offsets = [2, 2, 0], sizes = [1, 1, 128], strides = [1, 1, 1]} : vector<3x3x128xf32> to vector<1x1x128xf32>
    %63 = vector.shape_cast %62 : vector<1x1x128xf32> to vector<128xf32>
    %64 = vector.shape_cast %63 : vector<128xf32> to vector<1x1x128xf32>
    %65 = vector.broadcast %64 : vector<1x1x128xf32> to vector<16x16x128xf32>
    %66 = arith.mulf %61, %65 : vector<16x16x128xf32>
    %67 = arith.addf %60, %66 : vector<16x16x128xf32>
    %c0_5 = arith.constant 0 : index
    %c0_6 = arith.constant 0 : index
    %68 = vector.load %arg4[%c0_5, %c0_6] : memref<1x128xf32, #tpu.memory_space<vmem>>, vector<1x128xf32>
    %69 = vector.shape_cast %68 : vector<1x128xf32> to vector<1x1x128xf32>
    %70 = vector.broadcast %69 : vector<1x1x128xf32> to vector<16x16x128xf32>
    %71 = arith.addf %67, %70 : vector<16x16x128xf32>
    %cst = arith.constant 0.000000e+00 : f32
    %72 = vector.broadcast %cst : f32 to vector<16x16x128xf32>
    %73 = arith.maximumf %71, %72 : vector<16x16x128xf32>
    %74 = vector.shape_cast %73 : vector<16x16x128xf32> to vector<256x128xf32>
    %75 = arith.truncf %74 : vector<256x128xf32> to vector<256x128xbf16>
    %c0_7 = arith.constant 0 : index
    %c0_8 = arith.constant 0 : index
    %76 = vector.load %arg5[%c0_7, %c0_8] : memref<128x128xbf16, #tpu.memory_space<vmem>>, vector<128x128xbf16>
    %cst_9 = arith.constant dense<0.000000e+00> : vector<256x128xf32>
    %77 = tpu.matmul %75, %76, %cst_9 {dimension_numbers = #tpu.dot_dimension_numbers<[1], [0], [0], [1], [0, 0, 1, 1], [], []>} : vector<256x128xbf16>, vector<128x128xbf16>, vector<256x128xf32> -> vector<256x128xf32>
    %c0_10 = arith.constant 0 : index
    %c0_11 = arith.constant 0 : index
    %78 = vector.load %arg6[%c0_10, %c0_11] : memref<1x128xf32, #tpu.memory_space<vmem>>, vector<1x128xf32>
    %79 = vector.broadcast %78 : vector<1x128xf32> to vector<256x128xf32>
    %80 = arith.addf %77, %79 : vector<256x128xf32>
    %cst_12 = arith.constant 0.000000e+00 : f32
    %81 = vector.broadcast %cst_12 : f32 to vector<256x128xf32>
    %82 = arith.maximumf %80, %81 : vector<256x128xf32>
    %c0_13 = arith.constant 0 : index
    %c0_14 = arith.constant 0 : index
    %c0_15 = arith.constant 0 : index
    %83 = vector.load %arg7[%c0_13, %c0_14, %c0_15] : memref<1x256x128xf32, #tpu.memory_space<vmem>>, vector<1x256x128xf32>
    %84 = vector.shape_cast %83 : vector<1x256x128xf32> to vector<256x128xf32>
    %85 = vector.shape_cast %82 : vector<256x128xf32> to vector<1x256x128xf32>
    tpu.vector_store %arg7[%c0_13, %c0_14, %c0_15], %85 {strides = array<i32>} : memref<1x256x128xf32, #tpu.memory_space<vmem>>, vector<1x256x128xf32>,
    return
  }
  func.func @transform_0(%arg0: i32, %arg1: i32) -> (i32, i32, i32, i32) {
    %c0_i32 = arith.constant 0 : i32
    %c0_i32_0 = arith.constant 0 : i32
    %c0_i32_1 = arith.constant 0 : i32
    %c0_i32_2 = arith.constant 0 : i32
    return %arg0, %c0_i32, %c0_i32_0, %c0_i32_1 : i32, i32, i32, i32
  }
  func.func @transform_1(%arg0: i32, %arg1: i32) -> (i32, i32, i32) {
    %c0_i32 = arith.constant 0 : i32
    %c0_i32_0 = arith.constant 0 : i32
    %c0_i32_1 = arith.constant 0 : i32
    %c0_i32_2 = arith.constant 0 : i32
    return %c0_i32, %c0_i32_0, %c0_i32_1 : i32, i32, i32
  }
  func.func @transform_2(%arg0: i32, %arg1: i32) -> (i32, i32) {
    %c0_i32 = arith.constant 0 : i32
    %c0_i32_0 = arith.constant 0 : i32
    %c0_i32_1 = arith.constant 0 : i32
    return %c0_i32, %c0_i32_0 : i32, i32
  }
  func.func @transform_3(%arg0: i32, %arg1: i32) -> (i32, i32) {
    %c0_i32 = arith.constant 0 : i32
    %c0_i32_0 = arith.constant 0 : i32
    %c0_i32_1 = arith.constant 0 : i32
    return %c0_i32, %c0_i32_0 : i32, i32
  }
  func.func @transform_4(%arg0: i32, %arg1: i32) -> (i32, i32) {
    %c0_i32 = arith.constant 0 : i32
    %c0_i32_0 = arith.constant 0 : i32
    %c0_i32_1 = arith.constant 0 : i32
    return %c0_i32, %c0_i32_0 : i32, i32
  }
  func.func @transform_5(%arg0: i32, %arg1: i32) -> (i32, i32, i32) {
    %c0_i32 = arith.constant 0 : i32
    %c0_i32_0 = arith.constant 0 : i32
    return %arg0, %arg1, %c0_i32 : i32, i32, i32
  }
}

</mosaic_0001>

<llo_original>
// kernel: tpu_custom_call.1
$region0: #{tpu_custom_call.1}
  #allocation0 [shape = 'u32[]', space=smem, size = 0x4, offset = 0x4, fixed_abs, tag = 'smem constant byte address 0x4 - core index']
  #allocation1 [shape = 'u32[72,128]{1,0:T(1,128)}', space=vmem, size = 0x9000, scoped, tag = 'internal scratch']
  %s0 = inlined_call_operand.hbm [shape: f32[2,18,24,128], index: 0, kind: input, shape index: {}]
  %s1 = inlined_call_operand.hbm [shape: f32[3,3,128], index: 1, kind: input, shape index: {}]
  %s2 = inlined_call_operand.vmem [shape: f32[1,128], index: 2, kind: input, shape index: {}]
  %s3 = inlined_call_operand.hbm [shape: bf16[128,128], index: 3, kind: input, shape index: {}]
  %s4 = inlined_call_operand.vmem [shape: f32[1,128], index: 4, kind: input, shape index: {}]
  %s5 = inlined_call_operand.hbm [shape: f32[2,256,128], index: 5, kind: output, shape index: {}]
  %s6 = sld [smem:[#allocation0]]
  $region65: #{tpu_custom_call.1} parent=0
    _
  %s8 = ssub.s32 1, %s6
  %s9 = scalar_select 0, %s8, %s6
  $region1: #{tpu_custom_call.1} parent=0
    #allocation2 [shape = 'u8[442368]{0}', space=vmem, size = 0x6c000, scoped, tag = 'input window, operand 0']
    #allocation3 [shape = 's32[2]{0}', space=sflag, size = 0x8, scoped, tag = 'scoped memory for tpu_custom_call.1']
    #allocation4 [shape = 's32[2]{0}', space=sflag, size = 0x8, scoped, tag = 'scoped memory for tpu_custom_call.1']
    #allocation5 [shape = 'u8[6144]{0}', space=vmem, size = 0x1800, scoped, tag = 'input window, operand 1, single buffered']
    #allocation6 [shape = 's32[1]{0}', space=sflag, size = 0x4, scoped, tag = 'scoped memory for tpu_custom_call.1']
    #allocation7 [shape = 'u8[32768]{0}', space=vmem, size = 0x8000, scoped, tag = 'input window, operand 3, single buffered']
    #allocation8 [shape = 'u8[262144]{0}', space=vmem, size = 0x40000, scoped, tag = 'output window, operand 0']
    %10 = vsyncpa [#allocation3], 0
    %s11 = scalar_lea.sflag [#allocation3], 1
    %12 = vsyncpa %s11, 0
    %13 = vsyncpa [#allocation6], 0
    %14 = vsyncpa [#allocation4], 0
    %s15 = scalar_lea.sflag [#allocation4], 1
    %16 = vsyncpa %s15, 0
    loop: start=0, step=1, limit=4
    $region2: #{tpu_custom_call.1} parent=1 // loop_pre_header
      _
    $region3: #{tpu_custom_call.1} parent=1 // loop_header
      %s18 = sphi 0, %s22
      %p19 = scmp.ge.s32.totalorder %s18, 4
      %s25 = sphi 0, %s37
      %s26 = sphi 0, %s33
      %s27 = sphi 0, %s25
      %s28 = sphi 0, %s26
      %s29 = sphi 0, %s27
      %s30 = sphi 0, %s28
      %s40 = sphi 0, %s42
      %s43 = sphi 0, %s40
      %s44 = sphi 0, %s43
      %s60 = sphi 0, %s44
      %s64 = sphi 0, %s64
      %s66 = sphi 0, %s64
      %s67 = sphi 0, %s66
      %s81 = sphi 0, %s67
      %s85 = sphi 0, %s85
      %s87 = sphi 0, %s85
      %s88 = sphi 0, %s87
      %s102 = sphi 0, %s88
      %s106 = sphi 0, %s106
      %s108 = sphi 0, %s106
      %s109 = sphi 0, %s108
      %s123 = sphi 0, %s109
      %s127 = sphi 0, %s127
      %s129 = sphi 0, %s127
      %s130 = sphi 0, %s129
      %s144 = sphi 0, %s130
      %s152 = sphi 0, %s154
      %s155 = sphi 0, %s152
      %s156 = sphi 0, %s155
      %s172 = sphi 0, %s156
    $region4: #{tpu_custom_call.1} parent=1 // loop_header_branch
      %21 = sbr.rel (%p19) target = $region8
    $region5: #{tpu_custom_call.1} parent=1 // loop_body
      %s23 = ssub.s32 %s18, 1
      %s24 = ssub.s32 %s18, 2
      %s31 = sadd.s32 1, %s26
      %p32 = scmp.ge.s32.totalorder %s31, 1
      %s33 = scalar_select %p32, 0, %s31
      %s34 = sadd.s32 1, %s25
      %s35 = scalar_select %p32, %s34, %s25
      %p36 = scmp.ge.s32.totalorder %s35, 2
      %s37 = scalar_select %p36, 0, %s35
      %s38 = ssub.s32 %s25, %s37
      %p39 = scmp.eq.s32.totalorder %s38, 0
      %s41 = sadd.s32 %s40, 1
      %s42 = scalar_select %p39, %s40, %s41
      %p45 = pneg %p39
      %p46 = scmp.eq.s32.totalorder %s18, 1
      %p47 = por %p45, %p46
      %p48 = scmp.ne.s32.totalorder %s40, %s43
      %p49 = scmp.eq.s32.totalorder %s18, 0
      %p50 = por %p48, %p49
      %p51 = scmp.ne.s32.totalorder %s40, %s43
      %p52 = scmp.eq.s32.totalorder %s23, 1
      %p53 = por %p51, %p52
      %p54 = scmp.ne.s32.totalorder %s43, %s44
      %p55 = scmp.eq.s32.totalorder %s23, 0
      %p56 = por %p54, %p55
      %p57 = scmp.ne.s32.totalorder %s43, %s44
      %p58 = scmp.eq.s32.totalorder %s24, 1
      %p59 = por %p57, %p58
      %p61 = scmp.ne.s32.totalorder %s44, %s60
      %p62 = scmp.eq.s32.totalorder %s24, 0
      %p63 = por %p61, %p62
      %s65 = sadd.s32 %s64, 1
      %p68 = scmp.eq.s32.totalorder %s18, 1
      %p69 = scmp.ne.s32.totalorder %s64, %s66
      %p70 = scmp.eq.s32.totalorder %s18, 0
      %p71 = por %p69, %p70
      %p72 = scmp.ne.s32.totalorder %s64, %s66
      %p73 = scmp.eq.s32.totalorder %s23, 1
      %p74 = por %p72, %p73
      %p75 = scmp.ne.s32.totalorder %s66, %s67
      %p76 = scmp.eq.s32.totalorder %s23, 0
      %p77 = por %p75, %p76
      %p78 = scmp.ne.s32.totalorder %s66, %s67
      %p79 = scmp.eq.s32.totalorder %s24, 1
      %p80 = por %p78, %p79
      %p82 = scmp.ne.s32.totalorder %s67, %s81
      %p83 = scmp.eq.s32.totalorder %s24, 0
      %p84 = por %p82, %p83
      %s86 = sadd.s32 %s85, 1
      %p89 = scmp.eq.s32.totalorder %s18, 1
      %p90 = scmp.ne.s32.totalorder %s85, %s87
      %p91 = scmp.eq.s32.totalorder %s18, 0
      %p92 = por %p90, %p91
      %p93 = scmp.ne.s32.totalorder %s85, %s87
      %p94 = scmp.eq.s32.totalorder %s23, 1
      %p95 = por %p93, %p94
      %p96 = scmp.ne.s32.totalorder %s87, %s88
      %p97 = scmp.eq.s32.totalorder %s23, 0
      %p98 = por %p96, %p97
      %p99 = scmp.ne.s32.totalorder %s87, %s88
      %p100 = scmp.eq.s32.totalorder %s24, 1
      %p101 = por %p99, %p100
      %p103 = scmp.ne.s32.totalorder %s88, %s102
      %p104 = scmp.eq.s32.totalorder %s24, 0
      %p105 = por %p103, %p104
      %s107 = sadd.s32 %s106, 1
      %p110 = scmp.eq.s32.totalorder %s18, 1
      %p111 = scmp.ne.s32.totalorder %s106, %s108
      %p112 = scmp.eq.s32.totalorder %s18, 0
      %p113 = por %p111, %p112
      %p114 = scmp.ne.s32.totalorder %s106, %s108
      %p115 = scmp.eq.s32.totalorder %s23, 1
      %p116 = por %p114, %p115
      %p117 = scmp.ne.s32.totalorder %s108, %s109
      %p118 = scmp.eq.s32.totalorder %s23, 0
      %p119 = por %p117, %p118
      %p120 = scmp.ne.s32.totalorder %s108, %s109
      %p121 = scmp.eq.s32.totalorder %s24, 1
      %p122 = por %p120, %p121
      %p124 = scmp.ne.s32.totalorder %s109, %s123
      %p125 = scmp.eq.s32.totalorder %s24, 0
      %p126 = por %p124, %p125
      %s128 = sadd.s32 %s127, 1
      %p131 = scmp.eq.s32.totalorder %s18, 1
      %p132 = scmp.ne.s32.totalorder %s127, %s129
      %p133 = scmp.eq.s32.totalorder %s18, 0
      %p134 = por %p132, %p133
      %p135 = scmp.ne.s32.totalorder %s127, %s129
      %p136 = scmp.eq.s32.totalorder %s23, 1
      %p137 = por %p135, %p136
      %p138 = scmp.ne.s32.totalorder %s129, %s130
      %p139 = scmp.eq.s32.totalorder %s23, 0
      %p140 = por %p138, %p139
      %p141 = scmp.ne.s32.totalorder %s129, %s130
      %p142 = scmp.eq.s32.totalorder %s24, 1
      %p143 = por %p141, %p142
      %p145 = scmp.ne.s32.totalorder %s130, %s144
      %p146 = scmp.eq.s32.totalorder %s24, 0
      %p147 = por %p145, %p146
      %s148 = ssub.s32 %s25, %s37
      %s149 = ssub.s32 %s26, %s33
      %s150 = sor.u32 %s148, %s149
      %p151 = scmp.eq.s32.totalorder %s150, 0
      %s153 = sadd.s32 %s152, 1
      %s154 = scalar_select %p151, %s152, %s153
      %p157 = pneg %p151
      %p158 = scmp.eq.s32.totalorder %s18, 1
      %p159 = por %p157, %p158
      %p160 = scmp.ne.s32.totalorder %s152, %s155
      %p161 = scmp.eq.s32.totalorder %s18, 0
      %p162 = por %p160, %p161
      %p163 = scmp.ne.s32.totalorder %s152, %s155
      %p164 = scmp.eq.s32.totalorder %s23, 1
      %p165 = por %p163, %p164
      %p166 = scmp.ne.s32.totalorder %s155, %s156
      %p167 = scmp.eq.s32.totalorder %s23, 0
      %p168 = por %p166, %p167
      %p169 = scmp.ne.s32.totalorder %s155, %s156
      %p170 = scmp.eq.s32.totalorder %s24, 1
      %p171 = por %p169, %p170
      %p173 = scmp.ne.s32.totalorder %s156, %s172
      %p174 = scmp.eq.s32.totalorder %s24, 0
      %p175 = por %p173, %p174
      %p176 = scmp.le.s32.totalorder 1, %s18
      %p177 = scmp.lt.s32.totalorder %s18, 3
      %p178 = pnand %p176, %p177
      %p179 = pneg %p178
      // Predicated region
      $region9: #{tpu_custom_call.1} parent=5 // pred_check
        _
      $region10: #{tpu_custom_call.1} parent=5 // pred_check_branch
        %181 = sbr.rel (%p178) target = $region12
      $region11: #{tpu_custom_call.1} parent=5 // pred_region
        %s182 = ssub.s32 %s18, 1
        // Predicated region
        $region13: #{tpu_custom_call.1} parent=11 // pred_check
          %p183 = pneg %p77
        $region14: #{tpu_custom_call.1} parent=11 // pred_check_branch
          %185 = sbr.rel (%p183) target = $region16
        $region15: #{tpu_custom_call.1} parent=11 // pred_region
          %187 = vsyncadd [#allocation6], 0
          %s188 = sshll.u32 %s1, 4
          %s189 = int_to_ptr.hbm [resolvable:$true] %s188
          %s190 = sshll.u32 [#allocation5], 4
          %s191 = int_to_ptr.vmem [resolvable:$true] %s190
          %196 = dma.hbm_to_vmem [thread:$0]  %s189, 192, %s191, [#allocation6], 64, 64, 4
        $region16: #{tpu_custom_call.1} parent=11 // pred_fallthru
          _
        // Predicated region
        $region17: #{tpu_custom_call.1} parent=11 // pred_check
          %p197 = pneg %p98
        $region18: #{tpu_custom_call.1} parent=11 // pred_check_branch
          %199 = sbr.rel (%p197) target = $region20
        $region19: #{tpu_custom_call.1} parent=11 // pred_region
          _
        $region20: #{tpu_custom_call.1} parent=11 // pred_fallthru
          _
        // Predicated region
        $region21: #{tpu_custom_call.1} parent=11 // pred_check
          %p200 = pneg %p119
        $region22: #{tpu_custom_call.1} parent=11 // pred_check_branch
          %202 = sbr.rel (%p200) target = $region24
        $region23: #{tpu_custom_call.1} parent=11 // pred_region
          %204 = vsyncadd [#allocation6], 0
          %s205 = sshll.u32 %s3, 4
          %s206 = int_to_ptr.hbm [resolvable:$true] %s205
          %s207 = sshll.u32 [#allocation7], 4
          %s208 = int_to_ptr.vmem [resolvable:$true] %s207
          %213 = dma.hbm_to_vmem [thread:$0]  %s206, 1024, %s208, [#allocation6], 64, 64, 4
        $region24: #{tpu_custom_call.1} parent=11 // pred_fallthru
          _
        // Predicated region
        $region25: #{tpu_custom_call.1} parent=11 // pred_check
          %p214 = pneg %p140
        $region26: #{tpu_custom_call.1} parent=11 // pred_check_branch
          %216 = sbr.rel (%p214) target = $region28
        $region27: #{tpu_custom_call.1} parent=11 // pred_region
          _
        $region28: #{tpu_custom_call.1} parent=11 // pred_fallthru
          _
      $region12: #{tpu_custom_call.1} parent=5 // pred_fallthru
        _
      %p217 = scmp.lt.s32.totalorder %s18, 2
      // Predicated region
      $region29: #{tpu_custom_call.1} parent=5 // pred_check
        %p218 = pneg %p217
      $region30: #{tpu_custom_call.1} parent=5 // pred_check_branch
        %220 = sbr.rel (%p218) target = $region32
      $region31: #{tpu_custom_call.1} parent=5 // pred_region
        // Predicated region
        $region33: #{tpu_custom_call.1} parent=31 // pred_check
          %p221 = pneg %p50
        $region34: #{tpu_custom_call.1} parent=31 // pred_check_branch
          %223 = sbr.rel (%p221) target = $region36
        $region35: #{tpu_custom_call.1} parent=31 // pred_region
          %s224 = sand.u32 %s40, 1
          %s225 = scalar_lea.sflag [#allocation3], %s224
          %s226 = sand.u32 %s40, 1
          %s227 = smul.addr %s226, 432
          %s228 = scalar_lea.vmem [#allocation2], %s227
          %230 = vsyncadd %s225, 0
          %s231 = smul.addr %s25, 54
          %s232 = smul.addr %s231, 8
          %s233 = scalar_lea.hbm %s0, %s232
          %s234 = sshll.u32 %s233, 4
          %s235 = int_to_ptr.hbm [resolvable:$true] %s234
          %s236 = sshll.u32 %s228, 4
          %s237 = int_to_ptr.vmem [resolvable:$true] %s236
          %242 = dma.hbm_to_vmem [thread:$0]  %s235, 6912, %s237, %s225, 128, 128, 8
        $region36: #{tpu_custom_call.1} parent=31 // pred_fallthru
          _
      $region32: #{tpu_custom_call.1} parent=5 // pred_fallthru
        _
      %p243 = scmp.le.s32.totalorder 1, %s18
      %p244 = scmp.lt.s32.totalorder %s18, 3
      %p245 = pnand %p243, %p244
      %p246 = pneg %p245
      // Predicated region
      $region37: #{tpu_custom_call.1} parent=5 // pred_check
        _
      $region38: #{tpu_custom_call.1} parent=5 // pred_check_branch
        %248 = sbr.rel (%p245) target = $region40
      $region39: #{tpu_custom_call.1} parent=5 // pred_region
        %s249 = ssub.s32 %s18, 1
        %s250 = sand.u32 %s43, 1
        %s251 = scalar_lea.sflag [#allocation3], %s250
        %s252 = sand.u32 %s43, 1
        %s253 = smul.addr %s252, 432
        %s254 = scalar_lea.vmem [#allocation2], %s253
        // Predicated region
        $region41: #{tpu_custom_call.1} parent=39 // pred_check
          %p255 = pneg %p56
        $region42: #{tpu_custom_call.1} parent=39 // pred_check_branch
          %257 = sbr.rel (%p255) target = $region44
        $region43: #{tpu_custom_call.1} parent=39 // pred_region
          %259 = dma.done %s251, 6912
        $region44: #{tpu_custom_call.1} parent=39 // pred_fallthru
          _
        // Predicated region
        $region45: #{tpu_custom_call.1} parent=39 // pred_check
          %p260 = pneg %p77
        $region46: #{tpu_custom_call.1} parent=39 // pred_check_branch
          %262 = sbr.rel (%p260) target = $region48
        $region47: #{tpu_custom_call.1} parent=39 // pred_region
          %264 = dma.done [#allocation6], 192
        $region48: #{tpu_custom_call.1} parent=39 // pred_fallthru
          _
        // Predicated region
        $region49: #{tpu_custom_call.1} parent=39 // pred_check
          %p265 = pneg %p119
        $region50: #{tpu_custom_call.1} parent=39 // pred_check_branch
          %267 = sbr.rel (%p265) target = $region52
        $region51: #{tpu_custom_call.1} parent=39 // pred_region
          %269 = dma.done [#allocation6], 1024
        $region52: #{tpu_custom_call.1} parent=39 // pred_fallthru
          _
        %s270 = sand.u32 %s43, 1
        %s271 = scalar_lea.sflag [#allocation3], %s270
        %s272 = sand.u32 %s43, 1
        %s273 = smul.addr %s272, 432
        %s274 = scalar_lea.vmem [#allocation2], %s273
        %p275 = pneg %p56
        %p276 = pneg %p53
        %p277 = pneg %p77
        %p278 = pneg %p74
        %p279 = pneg %p98
        %p280 = pneg %p95
        %p281 = pneg %p119
        %p282 = pneg %p116
        %p283 = pneg %p140
        %p284 = pneg %p137
        %p285 = pneg %p168
        %p286 = pneg %p165
        %s287 = sand.u32 %s155, 1
        %s288 = scalar_lea.sflag [#allocation4], %s287
        %s289 = sand.u32 %s155, 1
        %s290 = smul.addr %s289, 256
        %s291 = scalar_lea.vmem [#allocation8], %s290
        %s292 = smul.u32 32, %s28
        %s293 = smul.u32 %s28, 16
        %s294 = smul.u32 %s293, 24
        %s295 = scalar_lea.vmem %s254, %s294 [#allocation2]
        %v296 = vld [vmem:[%s295] sm:$0xff]
        %v297 = vld [vmem:[%s295 + $0x8] sm:$0xff]
        %v298 = vld [vmem:[%s295 + $0x10] sm:$0xff]
        %v299 = vld [vmem:[%s295 + $0x18] sm:$0xff]
        %v300 = vld [vmem:[%s295 + $0x20] sm:$0xff]
        %v301 = vld [vmem:[%s295 + $0x28] sm:$0xff]
        %v302 = vld [vmem:[%s295 + $0x30] sm:$0xff]
        %v303 = vld [vmem:[%s295 + $0x38] sm:$0xff]
        %v304 = vld [vmem:[%s295 + $0x40] sm:$0xff]
        %v305 = vld [vmem:[%s295 + $0x48] sm:$0xff]
        %v306 = vld [vmem:[%s295 + $0x50] sm:$0xff]
        %v307 = vld [vmem:[%s295 + $0x58] sm:$0xff]
        %v308 = vld [vmem:[%s295 + $0x60] sm:$0xff]
        %v309 = vld [vmem:[%s295 + $0x68] sm:$0xff]
        %v310 = vld [vmem:[%s295 + $0x70] sm:$0xff]
        %v311 = vld [vmem:[%s295 + $0x78] sm:$0xff]
        %v312 = vld [vmem:[%s295 + $0x80] sm:$0xff]
        %v313 = vld [vmem:[%s295 + $0x88] sm:$0xff]
        %v314 = vld [vmem:[%s295 + $0x90] sm:$0xff]
        %v315 = vld [vmem:[%s295 + $0x98] sm:$0xff]
        %v316 = vld [vmem:[%s295 + $0xa0] sm:$0xff]
        %v317 = vld [vmem:[%s295 + $0xa8] sm:$0xff]
        %v318 = vld [vmem:[%s295 + $0xb0] sm:$0xff]
        %v319 = vld [vmem:[%s295 + $0xb8] sm:$0xff]
        %v320 = vld [vmem:[%s295 + $0xc0] sm:$0xff]
        %v321 = vld [vmem:[%s295 + $0xc8] sm:$0xff]
        %v322 = vld [vmem:[%s295 + $0xd0] sm:$0xff]
        %v323 = vld [vmem:[%s295 + $0xd8] sm:$0xff]
        %v324 = vld [vmem:[%s295 + $0xe0] sm:$0xff]
        %v325 = vld [vmem:[%s295 + $0xe8] sm:$0xff]
        %v326 = vld [vmem:[%s295 + $0xf0] sm:$0xff]
        %v327 = vld [vmem:[%s295 + $0xf8] sm:$0xff]
        %v328 = vld [vmem:[%s295 + $0x100] sm:$0xff]
        %v329 = vld [vmem:[%s295 + $0x108] sm:$0xff]
        %v330 = vld [vmem:[%s295 + $0x110] sm:$0xff]
        %v331 = vld [vmem:[%s295 + $0x118] sm:$0xff]
        %v332 = vld [vmem:[%s295 + $0x120] sm:$0xff]
        %v333 = vld [vmem:[%s295 + $0x128] sm:$0xff]
        %v334 = vld [vmem:[%s295 + $0x130] sm:$0xff]
        %v335 = vld [vmem:[%s295 + $0x138] sm:$0xff]
        %v336 = vld [vmem:[%s295 + $0x140] sm:$0xff]
        %v337 = vld [vmem:[%s295 + $0x148] sm:$0xff]
        %v338 = vld [vmem:[%s295 + $0x150] sm:$0xff]
        %v339 = vld [vmem:[%s295 + $0x158] sm:$0xff]
        %v340 = vld [vmem:[%s295 + $0x160] sm:$0xff]
        %v341 = vld [vmem:[%s295 + $0x168] sm:$0xff]
        %v342 = vld [vmem:[%s295 + $0x170] sm:$0xff]
        %v343 = vld [vmem:[%s295 + $0x178] sm:$0xff]
        %v344 = vld [vmem:[%s295 + $0x180] sm:$0xff]
        %v345 = vld [vmem:[%s295 + $0x188] sm:$0xff]
        %v346 = vld [vmem:[%s295 + $0x190] sm:$0xff]
        %v347 = vld [vmem:[%s295 + $0x198] sm:$0xff]
        %v348 = vld [vmem:[%s295 + $0x1a0] sm:$0xff]
        %v349 = vld [vmem:[%s295 + $0x1a8] sm:$0xff]
        %v350 = vld [vmem:[#allocation5] sm:$0x7]
        %v351 = vld [vmem:[#allocation5 + $0x4] sm:$0x7]
        %v352 = vld [vmem:[#allocation5 + $0x8] sm:$0x7]
        %v353 = vperm.slane %v350, 0
        %v354 = vmul.f32 %v296, %v353
        %v355 = vmul.f32 %v297, %v353
        %v356 = vmul.f32 %v299, %v353
        %v357 = vmul.f32 %v300, %v353
        %v358 = vmul.f32 %v302, %v353
        %v359 = vmul.f32 %v303, %v353
        %v360 = vmul.f32 %v305, %v353
        %v361 = vmul.f32 %v306, %v353
        %v362 = vmul.f32 %v308, %v353
        %v363 = vmul.f32 %v309, %v353
        %v364 = vmul.f32 %v311, %v353
        %v365 = vmul.f32 %v312, %v353
        %v366 = vmul.f32 %v314, %v353
        %v367 = vmul.f32 %v315, %v353
        %v368 = vmul.f32 %v317, %v353
        %v369 = vmul.f32 %v318, %v353
        %v370 = vmul.f32 %v320, %v353
        %v371 = vmul.f32 %v321, %v353
        %v372 = vmul.f32 %v323, %v353
        %v373 = vmul.f32 %v324, %v353
        %v374 = vmul.f32 %v326, %v353
        %v375 = vmul.f32 %v327, %v353
        %v376 = vmul.f32 %v329, %v353
        %v377 = vmul.f32 %v330, %v353
        %v378 = vmul.f32 %v332, %v353
        %v379 = vmul.f32 %v333, %v353
        %v380 = vmul.f32 %v335, %v353
        %v381 = vmul.f32 %v336, %v353
        %v382 = vmul.f32 %v338, %v353
        %v383 = vmul.f32 %v339, %v353
        %v384 = vmul.f32 %v341, %v353
        %v385 = vmul.f32 %v342, %v353
        %v386 = vperm.slane %v350, 1
        %v387 = vmul.f32 %v296, %v386
        %v388 = vmul.f32 %v297, %v386
        %v389 = vmul.f32 %v298, %v386
        %v390 = vmul.f32 %v299, %v386
        %v391 = vmul.f32 %v300, %v386
        %v392 = vmul.f32 %v301, %v386
        %v393 = vmul.f32 %v302, %v386
        %v394 = vmul.f32 %v303, %v386
        %v395 = vmul.f32 %v304, %v386
        %v396 = vmul.f32 %v305, %v386
        %v397 = vmul.f32 %v306, %v386
        %v398 = vmul.f32 %v307, %v386
        %v399 = vmul.f32 %v308, %v386
        %v400 = vmul.f32 %v309, %v386
        %v401 = vmul.f32 %v310, %v386
        %v402 = vmul.f32 %v311, %v386
        %v403 = vmul.f32 %v312, %v386
        %v404 = vmul.f32 %v313, %v386
        %v405 = vmul.f32 %v314, %v386
        %v406 = vmul.f32 %v315, %v386
        %v407 = vmul.f32 %v316, %v386
        %v408 = vmul.f32 %v317, %v386
        %v409 = vmul.f32 %v318, %v386
        %v410 = vmul.f32 %v319, %v386
        %v411 = vmul.f32 %v320, %v386
        %v412 = vmul.f32 %v321, %v386
        %v413 = vmul.f32 %v322, %v386
        %v414 = vmul.f32 %v323, %v386
        %v415 = vmul.f32 %v324, %v386
        %v416 = vmul.f32 %v325, %v386
        %v417 = vmul.f32 %v326, %v386
        %v418 = vmul.f32 %v327, %v386
        %v419 = vmul.f32 %v328, %v386
        %v420 = vmul.f32 %v329, %v386
        %v421 = vmul.f32 %v330, %v386
        %v422 = vmul.f32 %v331, %v386
        %v423 = vmul.f32 %v332, %v386
        %v424 = vmul.f32 %v333, %v386
        %v425 = vmul.f32 %v334, %v386
        %v426 = vmul.f32 %v335, %v386
        %v427 = vmul.f32 %v336, %v386
        %v428 = vmul.f32 %v337, %v386
        %v429 = vmul.f32 %v338, %v386
        %v430 = vmul.f32 %v339, %v386
        %v431 = vmul.f32 %v340, %v386
        %v432 = vmul.f32 %v341, %v386
        %v433 = vmul.f32 %v342, %v386
        %v434 = vmul.f32 %v343, %v386
        %vm483 = vcmask 1046528
        %v484 = vrot.slane %v387, 1
        %v485 = vrot.slane %v388, 1
        %v486 = vsel %vm483, %v484, %v485
        %v487 = vrot.slane %v389, 1
        %v488 = vsel %vm483, %v485, %v487
        %v489 = vrot.slane %v390, 1
        %v490 = vrot.slane %v391, 1
        %v491 = vsel %vm483, %v489, %v490
        %v492 = vrot.slane %v392, 1
        %v493 = vsel %vm483, %v490, %v492
        %v494 = vrot.slane %v393, 1
        %v495 = vrot.slane %v394, 1
        %v496 = vsel %vm483, %v494, %v495
        %v497 = vrot.slane %v395, 1
        %v498 = vsel %vm483, %v495, %v497
        %v499 = vrot.slane %v396, 1
        %v500 = vrot.slane %v397, 1
        %v501 = vsel %vm483, %v499, %v500
        %v502 = vrot.slane %v398, 1
        %v503 = vsel %vm483, %v500, %v502
        %v504 = vrot.slane %v399, 1
        %v505 = vrot.slane %v400, 1
        %v506 = vsel %vm483, %v504, %v505
        %v507 = vrot.slane %v401, 1
        %v508 = vsel %vm483, %v505, %v507
        %v509 = vrot.slane %v402, 1
        %v510 = vrot.slane %v403, 1
        %v511 = vsel %vm483, %v509, %v510
        %v512 = vrot.slane %v404, 1
        %v513 = vsel %vm483, %v510, %v512
        %v514 = vrot.slane %v405, 1
        %v515 = vrot.slane %v406, 1
        %v516 = vsel %vm483, %v514, %v515
        %v517 = vrot.slane %v407, 1
        %v518 = vsel %vm483, %v515, %v517
        %v519 = vrot.slane %v408, 1
        %v520 = vrot.slane %v409, 1
        %v521 = vsel %vm483, %v519, %v520
        %v522 = vrot.slane %v410, 1
        %v523 = vsel %vm483, %v520, %v522
        %v524 = vrot.slane %v411, 1
        %v525 = vrot.slane %v412, 1
        %v526 = vsel %vm483, %v524, %v525
        %v527 = vrot.slane %v413, 1
        %v528 = vsel %vm483, %v525, %v527
        %v529 = vrot.slane %v414, 1
        %v530 = vrot.slane %v415, 1
        %v531 = vsel %vm483, %v529, %v530
        %v532 = vrot.slane %v416, 1
        %v533 = vsel %vm483, %v530, %v532
        %v534 = vrot.slane %v417, 1
        %v535 = vrot.slane %v418, 1
        %v536 = vsel %vm483, %v534, %v535
        %v537 = vrot.slane %v419, 1
        %v538 = vsel %vm483, %v535, %v537
        %v539 = vrot.slane %v420, 1
        %v540 = vrot.slane %v421, 1
        %v541 = vsel %vm483, %v539, %v540
        %v542 = vrot.slane %v422, 1
        %v543 = vsel %vm483, %v540, %v542
        %v544 = vrot.slane %v423, 1
        %v545 = vrot.slane %v424, 1
        %v546 = vsel %vm483, %v544, %v545
        %v547 = vrot.slane %v425, 1
        %v548 = vsel %vm483, %v545, %v547
        %v549 = vrot.slane %v426, 1
        %v550 = vrot.slane %v427, 1
        %v551 = vsel %vm483, %v549, %v550
        %v552 = vrot.slane %v428, 1
        %v553 = vsel %vm483, %v550, %v552
        %v554 = vrot.slane %v429, 1
        %v555 = vrot.slane %v430, 1
        %v556 = vsel %vm483, %v554, %v555
        %v557 = vrot.slane %v431, 1
        %v558 = vsel %vm483, %v555, %v557
        %v559 = vrot.slane %v432, 1
        %v560 = vrot.slane %v433, 1
        %v561 = vsel %vm483, %v559, %v560
        %v562 = vrot.slane %v434, 1
        %v563 = vsel %vm483, %v560, %v562
        %v596 = vadd.f32 %v354, %v486
        %v597 = vadd.f32 %v355, %v488
        %v598 = vadd.f32 %v356, %v491
        %v599 = vadd.f32 %v357, %v493
        %v600 = vadd.f32 %v358, %v496
        %v601 = vadd.f32 %v359, %v498
        %v602 = vadd.f32 %v360, %v501
        %v603 = vadd.f32 %v361, %v503
        %v604 = vadd.f32 %v362, %v506
        %v605 = vadd.f32 %v363, %v508
        %v606 = vadd.f32 %v364, %v511
        %v607 = vadd.f32 %v365, %v513
        %v608 = vadd.f32 %v366, %v516
        %v609 = vadd.f32 %v367, %v518
        %v610 = vadd.f32 %v368, %v521
        %v611 = vadd.f32 %v369, %v523
        %v612 = vadd.f32 %v370, %v526
        %v613 = vadd.f32 %v371, %v528
        %v614 = vadd.f32 %v372, %v531
        %v615 = vadd.f32 %v373, %v533
        %v616 = vadd.f32 %v374, %v536
        %v617 = vadd.f32 %v375, %v538
        %v618 = vadd.f32 %v376, %v541
        %v619 = vadd.f32 %v377, %v543
        %v620 = vadd.f32 %v378, %v546
        %v621 = vadd.f32 %v379, %v548
        %v622 = vadd.f32 %v380, %v551
        %v623 = vadd.f32 %v381, %v553
        %v624 = vadd.f32 %v382, %v556
        %v625 = vadd.f32 %v383, %v558
        %v626 = vadd.f32 %v384, %v561
        %v627 = vadd.f32 %v385, %v563
        %v628 = vperm.slane %v350, 2
        %v629 = vmul.f32 %v296, %v628
        %v630 = vmul.f32 %v297, %v628
        %v631 = vmul.f32 %v298, %v628
        %v632 = vmul.f32 %v299, %v628
        %v633 = vmul.f32 %v300, %v628
        %v634 = vmul.f32 %v301, %v628
        %v635 = vmul.f32 %v302, %v628
        %v636 = vmul.f32 %v303, %v628
        %v637 = vmul.f32 %v304, %v628
        %v638 = vmul.f32 %v305, %v628
        %v639 = vmul.f32 %v306, %v628
        %v640 = vmul.f32 %v307, %v628
        %v641 = vmul.f32 %v308, %v628
        %v642 = vmul.f32 %v309, %v628
        %v643 = vmul.f32 %v310, %v628
        %v644 = vmul.f32 %v311, %v628
        %v645 = vmul.f32 %v312, %v628
        %v646 = vmul.f32 %v313, %v628
        %v647 = vmul.f32 %v314, %v628
        %v648 = vmul.f32 %v315, %v628
        %v649 = vmul.f32 %v316, %v628
        %v650 = vmul.f32 %v317, %v628
        %v651 = vmul.f32 %v318, %v628
        %v652 = vmul.f32 %v319, %v628
        %v653 = vmul.f32 %v320, %v628
        %v654 = vmul.f32 %v321, %v628
        %v655 = vmul.f32 %v322, %v628
        %v656 = vmul.f32 %v323, %v628
        %v657 = vmul.f32 %v324, %v628
        %v658 = vmul.f32 %v325, %v628
        %v659 = vmul.f32 %v326, %v628
        %v660 = vmul.f32 %v327, %v628
        %v661 = vmul.f32 %v328, %v628
        %v662 = vmul.f32 %v329, %v628
        %v663 = vmul.f32 %v330, %v628
        %v664 = vmul.f32 %v331, %v628
        %v665 = vmul.f32 %v332, %v628
        %v666 = vmul.f32 %v333, %v628
        %v667 = vmul.f32 %v334, %v628
        %v668 = vmul.f32 %v335, %v628
        %v669 = vmul.f32 %v336, %v628
        %v670 = vmul.f32 %v337, %v628
        %v671 = vmul.f32 %v338, %v628
        %v672 = vmul.f32 %v339, %v628
        %v673 = vmul.f32 %v340, %v628
        %v674 = vmul.f32 %v341, %v628
        %v675 = vmul.f32 %v342, %v628
        %v676 = vmul.f32 %v343, %v628
        %vm725 = vcmask 1045504
        %v726 = vrot.slane %v629, 2
        %v727 = vrot.slane %v630, 2
        %v728 = vsel %vm725, %v726, %v727
        %v729 = vrot.slane %v631, 2
        %v730 = vsel %vm725, %v727, %v729
        %v731 = vrot.slane %v632, 2
        %v732 = vrot.slane %v633, 2
        %v733 = vsel %vm725, %v731, %v732
        %v734 = vrot.slane %v634, 2
        %v735 = vsel %vm725, %v732, %v734
        %v736 = vrot.slane %v635, 2
        %v737 = vrot.slane %v636, 2
        %v738 = vsel %vm725, %v736, %v737
        %v739 = vrot.slane %v637, 2
        %v740 = vsel %vm725, %v737, %v739
        %v741 = vrot.slane %v638, 2
        %v742 = vrot.slane %v639, 2
        %v743 = vsel %vm725, %v741, %v742
        %v744 = vrot.slane %v640, 2
        %v745 = vsel %vm725, %v742, %v744
        %v746 = vrot.slane %v641, 2
        %v747 = vrot.slane %v642, 2
        %v748 = vsel %vm725, %v746, %v747
        %v749 = vrot.slane %v643, 2
        %v750 = vsel %vm725, %v747, %v749
        %v751 = vrot.slane %v644, 2
        %v752 = vrot.slane %v645, 2
        %v753 = vsel %vm725, %v751, %v752
        %v754 = vrot.slane %v646, 2
        %v755 = vsel %vm725, %v752, %v754
        %v756 = vrot.slane %v647, 2
        %v757 = vrot.slane %v648, 2
        %v758 = vsel %vm725, %v756, %v757
        %v759 = vrot.slane %v649, 2
        %v760 = vsel %vm725, %v757, %v759
        %v761 = vrot.slane %v650, 2
        %v762 = vrot.slane %v651, 2
        %v763 = vsel %vm725, %v761, %v762
        %v764 = vrot.slane %v652, 2
        %v765 = vsel %vm725, %v762, %v764
        %v766 = vrot.slane %v653, 2
        %v767 = vrot.slane %v654, 2
        %v768 = vsel %vm725, %v766, %v767
        %v769 = vrot.slane %v655, 2
        %v770 = vsel %vm725, %v767, %v769
        %v771 = vrot.slane %v656, 2
        %v772 = vrot.slane %v657, 2
        %v773 = vsel %vm725, %v771, %v772
        %v774 = vrot.slane %v658, 2
        %v775 = vsel %vm725, %v772, %v774
        %v776 = vrot.slane %v659, 2
        %v777 = vrot.slane %v660, 2
        %v778 = vsel %vm725, %v776, %v777
        %v779 = vrot.slane %v661, 2
        %v780 = vsel %vm725, %v777, %v779
        %v781 = vrot.slane %v662, 2
        %v782 = vrot.slane %v663, 2
        %v783 = vsel %vm725, %v781, %v782
        %v784 = vrot.slane %v664, 2
        %v785 = vsel %vm725, %v782, %v784
        %v786 = vrot.slane %v665, 2
        %v787 = vrot.slane %v666, 2
        %v788 = vsel %vm725, %v786, %v787
        %v789 = vrot.slane %v667, 2
        %v790 = vsel %vm725, %v787, %v789
        %v791 = vrot.slane %v668, 2
        %v792 = vrot.slane %v669, 2
        %v793 = vsel %vm725, %v791, %v792
        %v794 = vrot.slane %v670, 2
        %v795 = vsel %vm725, %v792, %v794
        %v796 = vrot.slane %v671, 2
        %v797 = vrot.slane %v672, 2
        %v798 = vsel %vm725, %v796, %v797
        %v799 = vrot.slane %v673, 2
        %v800 = vsel %vm725, %v797, %v799
        %v801 = vrot.slane %v674, 2
        %v802 = vrot.slane %v675, 2
        %v803 = vsel %vm725, %v801, %v802
        %v804 = vrot.slane %v676, 2
        %v805 = vsel %vm725, %v802, %v804
        %v838 = vadd.f32 %v596, %v728
        %v839 = vadd.f32 %v597, %v730
        %v840 = vadd.f32 %v598, %v733
        %v841 = vadd.f32 %v599, %v735
        %v842 = vadd.f32 %v600, %v738
        %v843 = vadd.f32 %v601, %v740
        %v844 = vadd.f32 %v602, %v743
        %v845 = vadd.f32 %v603, %v745
        %v846 = vadd.f32 %v604, %v748
        %v847 = vadd.f32 %v605, %v750
        %v848 = vadd.f32 %v606, %v753
        %v849 = vadd.f32 %v607, %v755
        %v850 = vadd.f32 %v608, %v758
        %v851 = vadd.f32 %v609, %v760
        %v852 = vadd.f32 %v610, %v763
        %v853 = vadd.f32 %v611, %v765
        %v854 = vadd.f32 %v612, %v768
        %v855 = vadd.f32 %v613, %v770
        %v856 = vadd.f32 %v614, %v773
        %v857 = vadd.f32 %v615, %v775
        %v858 = vadd.f32 %v616, %v778
        %v859 = vadd.f32 %v617, %v780
        %v860 = vadd.f32 %v618, %v783
        %v861 = vadd.f32 %v619, %v785
        %v862 = vadd.f32 %v620, %v788
        %v863 = vadd.f32 %v621, %v790
        %v864 = vadd.f32 %v622, %v793
        %v865 = vadd.f32 %v623, %v795
        %v866 = vadd.f32 %v624, %v798
        %v867 = vadd.f32 %v625, %v800
        %v868 = vadd.f32 %v626, %v803
        %v869 = vadd.f32 %v627, %v805
        %v870 = vperm.slane %v351, 0
        %v871 = vmul.f32 %v299, %v870
        %v872 = vmul.f32 %v300, %v870
        %v873 = vmul.f32 %v302, %v870
        %v874 = vmul.f32 %v303, %v870
        %v875 = vmul.f32 %v305, %v870
        %v876 = vmul.f32 %v306, %v870
        %v877 = vmul.f32 %v308, %v870
        %v878 = vmul.f32 %v309, %v870
        %v879 = vmul.f32 %v311, %v870
        %v880 = vmul.f32 %v312, %v870
        %v881 = vmul.f32 %v314, %v870
        %v882 = vmul.f32 %v315, %v870
        %v883 = vmul.f32 %v317, %v870
        %v884 = vmul.f32 %v318, %v870
        %v885 = vmul.f32 %v320, %v870
        %v886 = vmul.f32 %v321, %v870
        %v887 = vmul.f32 %v323, %v870
        %v888 = vmul.f32 %v324, %v870
        %v889 = vmul.f32 %v326, %v870
        %v890 = vmul.f32 %v327, %v870
        %v891 = vmul.f32 %v329, %v870
        %v892 = vmul.f32 %v330, %v870
        %v893 = vmul.f32 %v332, %v870
        %v894 = vmul.f32 %v333, %v870
        %v895 = vmul.f32 %v335, %v870
        %v896 = vmul.f32 %v336, %v870
        %v897 = vmul.f32 %v338, %v870
        %v898 = vmul.f32 %v339, %v870
        %v899 = vmul.f32 %v341, %v870
        %v900 = vmul.f32 %v342, %v870
        %v901 = vmul.f32 %v344, %v870
        %v902 = vmul.f32 %v345, %v870
        %v903 = vadd.f32 %v838, %v871
        %v904 = vadd.f32 %v839, %v872
        %v905 = vadd.f32 %v840, %v873
        %v906 = vadd.f32 %v841, %v874
        %v907 = vadd.f32 %v842, %v875
        %v908 = vadd.f32 %v843, %v876
        %v909 = vadd.f32 %v844, %v877
        %v910 = vadd.f32 %v845, %v878
        %v911 = vadd.f32 %v846, %v879
        %v912 = vadd.f32 %v847, %v880
        %v913 = vadd.f32 %v848, %v881
        %v914 = vadd.f32 %v849, %v882
        %v915 = vadd.f32 %v850, %v883
        %v916 = vadd.f32 %v851, %v884
        %v917 = vadd.f32 %v852, %v885
        %v918 = vadd.f32 %v853, %v886
        %v919 = vadd.f32 %v854, %v887
        %v920 = vadd.f32 %v855, %v888
        %v921 = vadd.f32 %v856, %v889
        %v922 = vadd.f32 %v857, %v890
        %v923 = vadd.f32 %v858, %v891
        %v924 = vadd.f32 %v859, %v892
        %v925 = vadd.f32 %v860, %v893
        %v926 = vadd.f32 %v861, %v894
        %v927 = vadd.f32 %v862, %v895
        %v928 = vadd.f32 %v863, %v896
        %v929 = vadd.f32 %v864, %v897
        %v930 = vadd.f32 %v865, %v898
        %v931 = vadd.f32 %v866, %v899
        %v932 = vadd.f32 %v867, %v900
        %v933 = vadd.f32 %v868, %v901
        %v934 = vadd.f32 %v869, %v902
        %v935 = vperm.slane %v351, 1
        %v936 = vmul.f32 %v299, %v935
        %v937 = vmul.f32 %v300, %v935
        %v938 = vmul.f32 %v301, %v935
        %v939 = vmul.f32 %v302, %v935
        %v940 = vmul.f32 %v303, %v935
        %v941 = vmul.f32 %v304, %v935
        %v942 = vmul.f32 %v305, %v935
        %v943 = vmul.f32 %v306, %v935
        %v944 = vmul.f32 %v307, %v935
        %v945 = vmul.f32 %v308, %v935
        %v946 = vmul.f32 %v309, %v935
        %v947 = vmul.f32 %v310, %v935
        %v948 = vmul.f32 %v311, %v935
        %v949 = vmul.f32 %v312, %v935
        %v950 = vmul.f32 %v313, %v935
        %v951 = vmul.f32 %v314, %v935
        %v952 = vmul.f32 %v315, %v935
        %v953 = vmul.f32 %v316, %v935
        %v954 = vmul.f32 %v317, %v935
        %v955 = vmul.f32 %v318, %v935
        %v956 = vmul.f32 %v319, %v935
        %v957 = vmul.f32 %v320, %v935
        %v958 = vmul.f32 %v321, %v935
        %v959 = vmul.f32 %v322, %v935
        %v960 = vmul.f32 %v323, %v935
        %v961 = vmul.f32 %v324, %v935
        %v962 = vmul.f32 %v325, %v935
        %v963 = vmul.f32 %v326, %v935
        %v964 = vmul.f32 %v327, %v935
        %v965 = vmul.f32 %v328, %v935
        %v966 = vmul.f32 %v329, %v935
        %v967 = vmul.f32 %v330, %v935
        %v968 = vmul.f32 %v331, %v935
        %v969 = vmul.f32 %v332, %v935
        %v970 = vmul.f32 %v333, %v935
        %v971 = vmul.f32 %v334, %v935
        %v972 = vmul.f32 %v335, %v935
        %v973 = vmul.f32 %v336, %v935
        %v974 = vmul.f32 %v337, %v935
        %v975 = vmul.f32 %v338, %v935
        %v976 = vmul.f32 %v339, %v935
        %v977 = vmul.f32 %v340, %v935
        %v978 = vmul.f32 %v341, %v935
        %v979 = vmul.f32 %v342, %v935
        %v980 = vmul.f32 %v343, %v935
        %v981 = vmul.f32 %v344, %v935
        %v982 = vmul.f32 %v345, %v935
        %v983 = vmul.f32 %v346, %v935
        %v1032 = vrot.slane %v936, 1
        %v1033 = vrot.slane %v937, 1
        %v1034 = vsel %vm483, %v1032, %v1033
        %v1035 = vrot.slane %v938, 1
        %v1036 = vsel %vm483, %v1033, %v1035
        %v1037 = vrot.slane %v939, 1
        %v1038 = vrot.slane %v940, 1
        %v1039 = vsel %vm483, %v1037, %v1038
        %v1040 = vrot.slane %v941, 1
        %v1041 = vsel %vm483, %v1038, %v1040
        %v1042 = vrot.slane %v942, 1
        %v1043 = vrot.slane %v943, 1
        %v1044 = vsel %vm483, %v1042, %v1043
        %v1045 = vrot.slane %v944, 1
        %v1046 = vsel %vm483, %v1043, %v1045
        %v1047 = vrot.slane %v945, 1
        %v1048 = vrot.slane %v946, 1
        %v1049 = vsel %vm483, %v1047, %v1048
        %v1050 = vrot.slane %v947, 1
        %v1051 = vsel %vm483, %v1048, %v1050
        %v1052 = vrot.slane %v948, 1
        %v1053 = vrot.slane %v949, 1
        %v1054 = vsel %vm483, %v1052, %v1053
        %v1055 = vrot.slane %v950, 1
        %v1056 = vsel %vm483, %v1053, %v1055
        %v1057 = vrot.slane %v951, 1
        %v1058 = vrot.slane %v952, 1
        %v1059 = vsel %vm483, %v1057, %v1058
        %v1060 = vrot.slane %v953, 1
        %v1061 = vsel %vm483, %v1058, %v1060
        %v1062 = vrot.slane %v954, 1
        %v1063 = vrot.slane %v955, 1
        %v1064 = vsel %vm483, %v1062, %v1063
        %v1065 = vrot.slane %v956, 1
        %v1066 = vsel %vm483, %v1063, %v1065
        %v1067 = vrot.slane %v957, 1
        %v1068 = vrot.slane %v958, 1
        %v1069 = vsel %vm483, %v1067, %v1068
        %v1070 = vrot.slane %v959, 1
        %v1071 = vsel %vm483, %v1068, %v1070
        %v1072 = vrot.slane %v960, 1
        %v1073 = vrot.slane %v961, 1
        %v1074 = vsel %vm483, %v1072, %v1073
        %v1075 = vrot.slane %v962, 1
        %v1076 = vsel %vm483, %v1073, %v1075
        %v1077 = vrot.slane %v963, 1
        %v1078 = vrot.slane %v964, 1
        %v1079 = vsel %vm483, %v1077, %v1078
        %v1080 = vrot.slane %v965, 1
        %v1081 = vsel %vm483, %v1078, %v1080
        %v1082 = vrot.slane %v966, 1
        %v1083 = vrot.slane %v967, 1
        %v1084 = vsel %vm483, %v1082, %v1083
        %v1085 = vrot.slane %v968, 1
        %v1086 = vsel %vm483, %v1083, %v1085
        %v1087 = vrot.slane %v969, 1
        %v1088 = vrot.slane %v970, 1
        %v1089 = vsel %vm483, %v1087, %v1088
        %v1090 = vrot.slane %v971, 1
        %v1091 = vsel %vm483, %v1088, %v1090
        %v1092 = vrot.slane %v972, 1
        %v1093 = vrot.slane %v973, 1
        %v1094 = vsel %vm483, %v1092, %v1093
        %v1095 = vrot.slane %v974, 1
        %v1096 = vsel %vm483, %v1093, %v1095
        %v1097 = vrot.slane %v975, 1
        %v1098 = vrot.slane %v976, 1
        %v1099 = vsel %vm483, %v1097, %v1098
        %v1100 = vrot.slane %v977, 1
        %v1101 = vsel %vm483, %v1098, %v1100
        %v1102 = vrot.slane %v978, 1
        %v1103 = vrot.slane %v979, 1
        %v1104 = vsel %vm483, %v1102, %v1103
        %v1105 = vrot.slane %v980, 1
        %v1106 = vsel %vm483, %v1103, %v1105
        %v1107 = vrot.slane %v981, 1
        %v1108 = vrot.slane %v982, 1
        %v1109 = vsel %vm483, %v1107, %v1108
        %v1110 = vrot.slane %v983, 1
        %v1111 = vsel %vm483, %v1108, %v1110
        %v1144 = vadd.f32 %v903, %v1034
        %v1145 = vadd.f32 %v904, %v1036
        %v1146 = vadd.f32 %v905, %v1039
        %v1147 = vadd.f32 %v906, %v1041
        %v1148 = vadd.f32 %v907, %v1044
        %v1149 = vadd.f32 %v908, %v1046
        %v1150 = vadd.f32 %v909, %v1049
        %v1151 = vadd.f32 %v910, %v1051
        %v1152 = vadd.f32 %v911, %v1054
        %v1153 = vadd.f32 %v912, %v1056
        %v1154 = vadd.f32 %v913, %v1059
        %v1155 = vadd.f32 %v914, %v1061
        %v1156 = vadd.f32 %v915, %v1064
        %v1157 = vadd.f32 %v916, %v1066
        %v1158 = vadd.f32 %v917, %v1069
        %v1159 = vadd.f32 %v918, %v1071
        %v1160 = vadd.f32 %v919, %v1074
        %v1161 = vadd.f32 %v920, %v1076
        %v1162 = vadd.f32 %v921, %v1079
        %v1163 = vadd.f32 %v922, %v1081
        %v1164 = vadd.f32 %v923, %v1084
        %v1165 = vadd.f32 %v924, %v1086
        %v1166 = vadd.f32 %v925, %v1089
        %v1167 = vadd.f32 %v926, %v1091
        %v1168 = vadd.f32 %v927, %v1094
        %v1169 = vadd.f32 %v928, %v1096
        %v1170 = vadd.f32 %v929, %v1099
        %v1171 = vadd.f32 %v930, %v1101
        %v1172 = vadd.f32 %v931, %v1104
        %v1173 = vadd.f32 %v932, %v1106
        %v1174 = vadd.f32 %v933, %v1109
        %v1175 = vadd.f32 %v934, %v1111
        %v1176 = vperm.slane %v351, 2
        %v1177 = vmul.f32 %v299, %v1176
        %v1178 = vmul.f32 %v300, %v1176
        %v1179 = vmul.f32 %v301, %v1176
        %v1180 = vmul.f32 %v302, %v1176
        %v1181 = vmul.f32 %v303, %v1176
        %v1182 = vmul.f32 %v304, %v1176
        %v1183 = vmul.f32 %v305, %v1176
        %v1184 = vmul.f32 %v306, %v1176
        %v1185 = vmul.f32 %v307, %v1176
        %v1186 = vmul.f32 %v308, %v1176
        %v1187 = vmul.f32 %v309, %v1176
        %v1188 = vmul.f32 %v310, %v1176
        %v1189 = vmul.f32 %v311, %v1176
        %v1190 = vmul.f32 %v312, %v1176
        %v1191 = vmul.f32 %v313, %v1176
        %v1192 = vmul.f32 %v314, %v1176
        %v1193 = vmul.f32 %v315, %v1176
        %v1194 = vmul.f32 %v316, %v1176
        %v1195 = vmul.f32 %v317, %v1176
        %v1196 = vmul.f32 %v318, %v1176
        %v1197 = vmul.f32 %v319, %v1176
        %v1198 = vmul.f32 %v320, %v1176
        %v1199 = vmul.f32 %v321, %v1176
        %v1200 = vmul.f32 %v322, %v1176
        %v1201 = vmul.f32 %v323, %v1176
        %v1202 = vmul.f32 %v324, %v1176
        %v1203 = vmul.f32 %v325, %v1176
        %v1204 = vmul.f32 %v326, %v1176
        %v1205 = vmul.f32 %v327, %v1176
        %v1206 = vmul.f32 %v328, %v1176
        %v1207 = vmul.f32 %v329, %v1176
        %v1208 = vmul.f32 %v330, %v1176
        %v1209 = vmul.f32 %v331, %v1176
        %v1210 = vmul.f32 %v332, %v1176
        %v1211 = vmul.f32 %v333, %v1176
        %v1212 = vmul.f32 %v334, %v1176
        %v1213 = vmul.f32 %v335, %v1176
        %v1214 = vmul.f32 %v336, %v1176
        %v1215 = vmul.f32 %v337, %v1176
        %v1216 = vmul.f32 %v338, %v1176
        %v1217 = vmul.f32 %v339, %v1176
        %v1218 = vmul.f32 %v340, %v1176
        %v1219 = vmul.f32 %v341, %v1176
        %v1220 = vmul.f32 %v342, %v1176
        %v1221 = vmul.f32 %v343, %v1176
        %v1222 = vmul.f32 %v344, %v1176
        %v1223 = vmul.f32 %v345, %v1176
        %v1224 = vmul.f32 %v346, %v1176
        %v1273 = vrot.slane %v1177, 2
        %v1274 = vrot.slane %v1178, 2
        %v1275 = vsel %vm725, %v1273, %v1274
        %v1276 = vrot.slane %v1179, 2
        %v1277 = vsel %vm725, %v1274, %v1276
        %v1278 = vrot.slane %v1180, 2
        %v1279 = vrot.slane %v1181, 2
        %v1280 = vsel %vm725, %v1278, %v1279
        %v1281 = vrot.slane %v1182, 2
        %v1282 = vsel %vm725, %v1279, %v1281
        %v1283 = vrot.slane %v1183, 2
        %v1284 = vrot.slane %v1184, 2
        %v1285 = vsel %vm725, %v1283, %v1284
        %v1286 = vrot.slane %v1185, 2
        %v1287 = vsel %vm725, %v1284, %v1286
        %v1288 = vrot.slane %v1186, 2
        %v1289 = vrot.slane %v1187, 2
        %v1290 = vsel %vm725, %v1288, %v1289
        %v1291 = vrot.slane %v1188, 2
        %v1292 = vsel %vm725, %v1289, %v1291
        %v1293 = vrot.slane %v1189, 2
        %v1294 = vrot.slane %v1190, 2
        %v1295 = vsel %vm725, %v1293, %v1294
        %v1296 = vrot.slane %v1191, 2
        %v1297 = vsel %vm725, %v1294, %v1296
        %v1298 = vrot.slane %v1192, 2
        %v1299 = vrot.slane %v1193, 2
        %v1300 = vsel %vm725, %v1298, %v1299
        %v1301 = vrot.slane %v1194, 2
        %v1302 = vsel %vm725, %v1299, %v1301
        %v1303 = vrot.slane %v1195, 2
        %v1304 = vrot.slane %v1196, 2
        %v1305 = vsel %vm725, %v1303, %v1304
        %v1306 = vrot.slane %v1197, 2
        %v1307 = vsel %vm725, %v1304, %v1306
        %v1308 = vrot.slane %v1198, 2
        %v1309 = vrot.slane %v1199, 2
        %v1310 = vsel %vm725, %v1308, %v1309
        %v1311 = vrot.slane %v1200, 2
        %v1312 = vsel %vm725, %v1309, %v1311
        %v1313 = vrot.slane %v1201, 2
        %v1314 = vrot.slane %v1202, 2
        %v1315 = vsel %vm725, %v1313, %v1314
        %v1316 = vrot.slane %v1203, 2
        %v1317 = vsel %vm725, %v1314, %v1316
        %v1318 = vrot.slane %v1204, 2
        %v1319 = vrot.slane %v1205, 2
        %v1320 = vsel %vm725, %v1318, %v1319
        %v1321 = vrot.slane %v1206, 2
        %v1322 = vsel %vm725, %v1319, %v1321
        %v1323 = vrot.slane %v1207, 2
        %v1324 = vrot.slane %v1208, 2
        %v1325 = vsel %vm725, %v1323, %v1324
        %v1326 = vrot.slane %v1209, 2
        %v1327 = vsel %vm725, %v1324, %v1326
        %v1328 = vrot.slane %v1210, 2
        %v1329 = vrot.slane %v1211, 2
        %v1330 = vsel %vm725, %v1328, %v1329
        %v1331 = vrot.slane %v1212, 2
        %v1332 = vsel %vm725, %v1329, %v1331
        %v1333 = vrot.slane %v1213, 2
        %v1334 = vrot.slane %v1214, 2
        %v1335 = vsel %vm725, %v1333, %v1334
        %v1336 = vrot.slane %v1215, 2
        %v1337 = vsel %vm725, %v1334, %v1336
        %v1338 = vrot.slane %v1216, 2
        %v1339 = vrot.slane %v1217, 2
        %v1340 = vsel %vm725, %v1338, %v1339
        %v1341 = vrot.slane %v1218, 2
        %v1342 = vsel %vm725, %v1339, %v1341
        %v1343 = vrot.slane %v1219, 2
        %v1344 = vrot.slane %v1220, 2
        %v1345 = vsel %vm725, %v1343, %v1344
        %v1346 = vrot.slane %v1221, 2
        %v1347 = vsel %vm725, %v1344, %v1346
        %v1348 = vrot.slane %v1222, 2
        %v1349 = vrot.slane %v1223, 2
        %v1350 = vsel %vm725, %v1348, %v1349
        %v1351 = vrot.slane %v1224, 2
        %v1352 = vsel %vm725, %v1349, %v1351
        %v1385 = vadd.f32 %v1144, %v1275
        %v1386 = vadd.f32 %v1145, %v1277
        %v1387 = vadd.f32 %v1146, %v1280
        %v1388 = vadd.f32 %v1147, %v1282
        %v1389 = vadd.f32 %v1148, %v1285
        %v1390 = vadd.f32 %v1149, %v1287
        %v1391 = vadd.f32 %v1150, %v1290
        %v1392 = vadd.f32 %v1151, %v1292
        %v1393 = vadd.f32 %v1152, %v1295
        %v1394 = vadd.f32 %v1153, %v1297
        %v1395 = vadd.f32 %v1154, %v1300
        %v1396 = vadd.f32 %v1155, %v1302
        %v1397 = vadd.f32 %v1156, %v1305
        %v1398 = vadd.f32 %v1157, %v1307
        %v1399 = vadd.f32 %v1158, %v1310
        %v1400 = vadd.f32 %v1159, %v1312
        %v1401 = vadd.f32 %v1160, %v1315
        %v1402 = vadd.f32 %v1161, %v1317
        %v1403 = vadd.f32 %v1162, %v1320
        %v1404 = vadd.f32 %v1163, %v1322
        %v1405 = vadd.f32 %v1164, %v1325
        %v1406 = vadd.f32 %v1165, %v1327
        %v1407 = vadd.f32 %v1166, %v1330
        %v1408 = vadd.f32 %v1167, %v1332
        %v1409 = vadd.f32 %v1168, %v1335
        %v1410 = vadd.f32 %v1169, %v1337
        %v1411 = vadd.f32 %v1170, %v1340
        %v1412 = vadd.f32 %v1171, %v1342
        %v1413 = vadd.f32 %v1172, %v1345
        %v1414 = vadd.f32 %v1173, %v1347
        %v1415 = vadd.f32 %v1174, %v1350
        %v1416 = vadd.f32 %v1175, %v1352
        %v1417 = vperm.slane %v352, 0
        %v1418 = vmul.f32 %v302, %v1417
        %v1419 = vmul.f32 %v303, %v1417
        %v1420 = vmul.f32 %v305, %v1417
        %v1421 = vmul.f32 %v306, %v1417
        %v1422 = vmul.f32 %v308, %v1417
        %v1423 = vmul.f32 %v309, %v1417
        %v1424 = vmul.f32 %v311, %v1417
        %v1425 = vmul.f32 %v312, %v1417
        %v1426 = vmul.f32 %v314, %v1417
        %v1427 = vmul.f32 %v315, %v1417
        %v1428 = vmul.f32 %v317, %v1417
        %v1429 = vmul.f32 %v318, %v1417
        %v1430 = vmul.f32 %v320, %v1417
        %v1431 = vmul.f32 %v321, %v1417
        %v1432 = vmul.f32 %v323, %v1417
        %v1433 = vmul.f32 %v324, %v1417
        %v1434 = vmul.f32 %v326, %v1417
        %v1435 = vmul.f32 %v327, %v1417
        %v1436 = vmul.f32 %v329, %v1417
        %v1437 = vmul.f32 %v330, %v1417
        %v1438 = vmul.f32 %v332, %v1417
        %v1439 = vmul.f32 %v333, %v1417
        %v1440 = vmul.f32 %v335, %v1417
        %v1441 = vmul.f32 %v336, %v1417
        %v1442 = vmul.f32 %v338, %v1417
        %v1443 = vmul.f32 %v339, %v1417
        %v1444 = vmul.f32 %v341, %v1417
        %v1445 = vmul.f32 %v342, %v1417
        %v1446 = vmul.f32 %v344, %v1417
        %v1447 = vmul.f32 %v345, %v1417
        %v1448 = vmul.f32 %v347, %v1417
        %v1449 = vmul.f32 %v348, %v1417
        %v1450 = vadd.f32 %v1385, %v1418
        %v1451 = vadd.f32 %v1386, %v1419
        %v1452 = vadd.f32 %v1387, %v1420
        %v1453 = vadd.f32 %v1388, %v1421
        %v1454 = vadd.f32 %v1389, %v1422
        %v1455 = vadd.f32 %v1390, %v1423
        %v1456 = vadd.f32 %v1391, %v1424
        %v1457 = vadd.f32 %v1392, %v1425
        %v1458 = vadd.f32 %v1393, %v1426
        %v1459 = vadd.f32 %v1394, %v1427
        %v1460 = vadd.f32 %v1395, %v1428
        %v1461 = vadd.f32 %v1396, %v1429
        %v1462 = vadd.f32 %v1397, %v1430
        %v1463 = vadd.f32 %v1398, %v1431
        %v1464 = vadd.f32 %v1399, %v1432
        %v1465 = vadd.f32 %v1400, %v1433
        %v1466 = vadd.f32 %v1401, %v1434
        %v1467 = vadd.f32 %v1402, %v1435
        %v1468 = vadd.f32 %v1403, %v1436
        %v1469 = vadd.f32 %v1404, %v1437
        %v1470 = vadd.f32 %v1405, %v1438
        %v1471 = vadd.f32 %v1406, %v1439
        %v1472 = vadd.f32 %v1407, %v1440
        %v1473 = vadd.f32 %v1408, %v1441
        %v1474 = vadd.f32 %v1409, %v1442
        %v1475 = vadd.f32 %v1410, %v1443
        %v1476 = vadd.f32 %v1411, %v1444
        %v1477 = vadd.f32 %v1412, %v1445
        %v1478 = vadd.f32 %v1413, %v1446
        %v1479 = vadd.f32 %v1414, %v1447
        %v1480 = vadd.f32 %v1415, %v1448
        %v1481 = vadd.f32 %v1416, %v1449
        %v1482 = vperm.slane %v352, 1
        %v1483 = vmul.f32 %v302, %v1482
        %v1484 = vmul.f32 %v303, %v1482
        %v1485 = vmul.f32 %v304, %v1482
        %v1486 = vmul.f32 %v305, %v1482
        %v1487 = vmul.f32 %v306, %v1482
        %v1488 = vmul.f32 %v307, %v1482
        %v1489 = vmul.f32 %v308, %v1482
        %v1490 = vmul.f32 %v309, %v1482
        %v1491 = vmul.f32 %v310, %v1482
        %v1492 = vmul.f32 %v311, %v1482
        %v1493 = vmul.f32 %v312, %v1482
        %v1494 = vmul.f32 %v313, %v1482
        %v1495 = vmul.f32 %v314, %v1482
        %v1496 = vmul.f32 %v315, %v1482
        %v1497 = vmul.f32 %v316, %v1482
        %v1498 = vmul.f32 %v317, %v1482
        %v1499 = vmul.f32 %v318, %v1482
        %v1500 = vmul.f32 %v319, %v1482
        %v1501 = vmul.f32 %v320, %v1482
        %v1502 = vmul.f32 %v321, %v1482
        %v1503 = vmul.f32 %v322, %v1482
        %v1504 = vmul.f32 %v323, %v1482
        %v1505 = vmul.f32 %v324, %v1482
        %v1506 = vmul.f32 %v325, %v1482
        %v1507 = vmul.f32 %v326, %v1482
        %v1508 = vmul.f32 %v327, %v1482
        %v1509 = vmul.f32 %v328, %v1482
        %v1510 = vmul.f32 %v329, %v1482
        %v1511 = vmul.f32 %v330, %v1482
        %v1512 = vmul.f32 %v331, %v1482
        %v1513 = vmul.f32 %v332, %v1482
        %v1514 = vmul.f32 %v333, %v1482
        %v1515 = vmul.f32 %v334, %v1482
        %v1516 = vmul.f32 %v335, %v1482
        %v1517 = vmul.f32 %v336, %v1482
        %v1518 = vmul.f32 %v337, %v1482
        %v1519 = vmul.f32 %v338, %v1482
        %v1520 = vmul.f32 %v339, %v1482
        %v1521 = vmul.f32 %v340, %v1482
        %v1522 = vmul.f32 %v341, %v1482
        %v1523 = vmul.f32 %v342, %v1482
        %v1524 = vmul.f32 %v343, %v1482
        %v1525 = vmul.f32 %v344, %v1482
        %v1526 = vmul.f32 %v345, %v1482
        %v1527 = vmul.f32 %v346, %v1482
        %v1528 = vmul.f32 %v347, %v1482
        %v1529 = vmul.f32 %v348, %v1482
        %v1530 = vmul.f32 %v349, %v1482
        %v1579 = vrot.slane %v1483, 1
        %v1580 = vrot.slane %v1484, 1
        %v1581 = vsel %vm483, %v1579, %v1580
        %v1582 = vrot.slane %v1485, 1
        %v1583 = vsel %vm483, %v1580, %v1582
        %v1584 = vrot.slane %v1486, 1
        %v1585 = vrot.slane %v1487, 1
        %v1586 = vsel %vm483, %v1584, %v1585
        %v1587 = vrot.slane %v1488, 1
        %v1588 = vsel %vm483, %v1585, %v1587
        %v1589 = vrot.slane %v1489, 1
        %v1590 = vrot.slane %v1490, 1
        %v1591 = vsel %vm483, %v1589, %v1590
        %v1592 = vrot.slane %v1491, 1
        %v1593 = vsel %vm483, %v1590, %v1592
        %v1594 = vrot.slane %v1492, 1
        %v1595 = vrot.slane %v1493, 1
        %v1596 = vsel %vm483, %v1594, %v1595
        %v1597 = vrot.slane %v1494, 1
        %v1598 = vsel %vm483, %v1595, %v1597
        %v1599 = vrot.slane %v1495, 1
        %v1600 = vrot.slane %v1496, 1
        %v1601 = vsel %vm483, %v1599, %v1600
        %v1602 = vrot.slane %v1497, 1
        %v1603 = vsel %vm483, %v1600, %v1602
        %v1604 = vrot.slane %v1498, 1
        %v1605 = vrot.slane %v1499, 1
        %v1606 = vsel %vm483, %v1604, %v1605
        %v1607 = vrot.slane %v1500, 1
        %v1608 = vsel %vm483, %v1605, %v1607
        %v1609 = vrot.slane %v1501, 1
        %v1610 = vrot.slane %v1502, 1
        %v1611 = vsel %vm483, %v1609, %v1610
        %v1612 = vrot.slane %v1503, 1
        %v1613 = vsel %vm483, %v1610, %v1612
        %v1614 = vrot.slane %v1504, 1
        %v1615 = vrot.slane %v1505, 1
        %v1616 = vsel %vm483, %v1614, %v1615
        %v1617 = vrot.slane %v1506, 1
        %v1618 = vsel %vm483, %v1615, %v1617
        %v1619 = vrot.slane %v1507, 1
        %v1620 = vrot.slane %v1508, 1
        %v1621 = vsel %vm483, %v1619, %v1620
        %v1622 = vrot.slane %v1509, 1
        %v1623 = vsel %vm483, %v1620, %v1622
        %v1624 = vrot.slane %v1510, 1
        %v1625 = vrot.slane %v1511, 1
        %v1626 = vsel %vm483, %v1624, %v1625
        %v1627 = vrot.slane %v1512, 1
        %v1628 = vsel %vm483, %v1625, %v1627
        %v1629 = vrot.slane %v1513, 1
        %v1630 = vrot.slane %v1514, 1
        %v1631 = vsel %vm483, %v1629, %v1630
        %v1632 = vrot.slane %v1515, 1
        %v1633 = vsel %vm483, %v1630, %v1632
        %v1634 = vrot.slane %v1516, 1
        %v1635 = vrot.slane %v1517, 1
        %v1636 = vsel %vm483, %v1634, %v1635
        %v1637 = vrot.slane %v1518, 1
        %v1638 = vsel %vm483, %v1635, %v1637
        %v1639 = vrot.slane %v1519, 1
        %v1640 = vrot.slane %v1520, 1
        %v1641 = vsel %vm483, %v1639, %v1640
        %v1642 = vrot.slane %v1521, 1
        %v1643 = vsel %vm483, %v1640, %v1642
        %v1644 = vrot.slane %v1522, 1
        %v1645 = vrot.slane %v1523, 1
        %v1646 = vsel %vm483, %v1644, %v1645
        %v1647 = vrot.slane %v1524, 1
        %v1648 = vsel %vm483, %v1645, %v1647
        %v1649 = vrot.slane %v1525, 1
        %v1650 = vrot.slane %v1526, 1
        %v1651 = vsel %vm483, %v1649, %v1650
        %v1652 = vrot.slane %v1527, 1
        %v1653 = vsel %vm483, %v1650, %v1652
        %v1654 = vrot.slane %v1528, 1
        %v1655 = vrot.slane %v1529, 1
        %v1656 = vsel %vm483, %v1654, %v1655
        %v1657 = vrot.slane %v1530, 1
        %v1658 = vsel %vm483, %v1655, %v1657
        %v1691 = vadd.f32 %v1450, %v1581
        %v1692 = vadd.f32 %v1451, %v1583
        %v1693 = vadd.f32 %v1452, %v1586
        %v1694 = vadd.f32 %v1453, %v1588
        %v1695 = vadd.f32 %v1454, %v1591
        %v1696 = vadd.f32 %v1455, %v1593
        %v1697 = vadd.f32 %v1456, %v1596
        %v1698 = vadd.f32 %v1457, %v1598
        %v1699 = vadd.f32 %v1458, %v1601
        %v1700 = vadd.f32 %v1459, %v1603
        %v1701 = vadd.f32 %v1460, %v1606
        %v1702 = vadd.f32 %v1461, %v1608
        %v1703 = vadd.f32 %v1462, %v1611
        %v1704 = vadd.f32 %v1463, %v1613
        %v1705 = vadd.f32 %v1464, %v1616
        %v1706 = vadd.f32 %v1465, %v1618
        %v1707 = vadd.f32 %v1466, %v1621
        %v1708 = vadd.f32 %v1467, %v1623
        %v1709 = vadd.f32 %v1468, %v1626
        %v1710 = vadd.f32 %v1469, %v1628
        %v1711 = vadd.f32 %v1470, %v1631
        %v1712 = vadd.f32 %v1471, %v1633
        %v1713 = vadd.f32 %v1472, %v1636
        %v1714 = vadd.f32 %v1473, %v1638
        %v1715 = vadd.f32 %v1474, %v1641
        %v1716 = vadd.f32 %v1475, %v1643
        %v1717 = vadd.f32 %v1476, %v1646
        %v1718 = vadd.f32 %v1477, %v1648
        %v1719 = vadd.f32 %v1478, %v1651
        %v1720 = vadd.f32 %v1479, %v1653
        %v1721 = vadd.f32 %v1480, %v1656
        %v1722 = vadd.f32 %v1481, %v1658
        %v1723 = vperm.slane %v352, 2
        %v1724 = vmul.f32 %v302, %v1723
        %v1725 = vmul.f32 %v303, %v1723
        %v1726 = vmul.f32 %v304, %v1723
        %v1727 = vmul.f32 %v305, %v1723
        %v1728 = vmul.f32 %v306, %v1723
        %v1729 = vmul.f32 %v307, %v1723
        %v1730 = vmul.f32 %v308, %v1723
        %v1731 = vmul.f32 %v309, %v1723
        %v1732 = vmul.f32 %v310, %v1723
        %v1733 = vmul.f32 %v311, %v1723
        %v1734 = vmul.f32 %v312, %v1723
        %v1735 = vmul.f32 %v313, %v1723
        %v1736 = vmul.f32 %v314, %v1723
        %v1737 = vmul.f32 %v315, %v1723
        %v1738 = vmul.f32 %v316, %v1723
        %v1739 = vmul.f32 %v317, %v1723
        %v1740 = vmul.f32 %v318, %v1723
        %v1741 = vmul.f32 %v319, %v1723
        %v1742 = vmul.f32 %v320, %v1723
        %v1743 = vmul.f32 %v321, %v1723
        %v1744 = vmul.f32 %v322, %v1723
        %v1745 = vmul.f32 %v323, %v1723
        %v1746 = vmul.f32 %v324, %v1723
        %v1747 = vmul.f32 %v325, %v1723
        %v1748 = vmul.f32 %v326, %v1723
        %v1749 = vmul.f32 %v327, %v1723
        %v1750 = vmul.f32 %v328, %v1723
        %v1751 = vmul.f32 %v329, %v1723
        %v1752 = vmul.f32 %v330, %v1723
        %v1753 = vmul.f32 %v331, %v1723
        %v1754 = vmul.f32 %v332, %v1723
        %v1755 = vmul.f32 %v333, %v1723
        %v1756 = vmul.f32 %v334, %v1723
        %v1757 = vmul.f32 %v335, %v1723
        %v1758 = vmul.f32 %v336, %v1723
        %v1759 = vmul.f32 %v337, %v1723
        %v1760 = vmul.f32 %v338, %v1723
        %v1761 = vmul.f32 %v339, %v1723
        %v1762 = vmul.f32 %v340, %v1723
        %v1763 = vmul.f32 %v341, %v1723
        %v1764 = vmul.f32 %v342, %v1723
        %v1765 = vmul.f32 %v343, %v1723
        %v1766 = vmul.f32 %v344, %v1723
        %v1767 = vmul.f32 %v345, %v1723
        %v1768 = vmul.f32 %v346, %v1723
        %v1769 = vmul.f32 %v347, %v1723
        %v1770 = vmul.f32 %v348, %v1723
        %v1771 = vmul.f32 %v349, %v1723
        %v1820 = vrot.slane %v1724, 2
        %v1821 = vrot.slane %v1725, 2
        %v1822 = vsel %vm725, %v1820, %v1821
        %v1823 = vrot.slane %v1726, 2
        %v1824 = vsel %vm725, %v1821, %v1823
        %v1825 = vrot.slane %v1727, 2
        %v1826 = vrot.slane %v1728, 2
        %v1827 = vsel %vm725, %v1825, %v1826
        %v1828 = vrot.slane %v1729, 2
        %v1829 = vsel %vm725, %v1826, %v1828
        %v1830 = vrot.slane %v1730, 2
        %v1831 = vrot.slane %v1731, 2
        %v1832 = vsel %vm725, %v1830, %v1831
        %v1833 = vrot.slane %v1732, 2
        %v1834 = vsel %vm725, %v1831, %v1833
        %v1835 = vrot.slane %v1733, 2
        %v1836 = vrot.slane %v1734, 2
        %v1837 = vsel %vm725, %v1835, %v1836
        %v1838 = vrot.slane %v1735, 2
        %v1839 = vsel %vm725, %v1836, %v1838
        %v1840 = vrot.slane %v1736, 2
        %v1841 = vrot.slane %v1737, 2
        %v1842 = vsel %vm725, %v1840, %v1841
        %v1843 = vrot.slane %v1738, 2
        %v1844 = vsel %vm725, %v1841, %v1843
        %v1845 = vrot.slane %v1739, 2
        %v1846 = vrot.slane %v1740, 2
        %v1847 = vsel %vm725, %v1845, %v1846
        %v1848 = vrot.slane %v1741, 2
        %v1849 = vsel %vm725, %v1846, %v1848
        %v1850 = vrot.slane %v1742, 2
        %v1851 = vrot.slane %v1743, 2
        %v1852 = vsel %vm725, %v1850, %v1851
        %v1853 = vrot.slane %v1744, 2
        %v1854 = vsel %vm725, %v1851, %v1853
        %v1855 = vrot.slane %v1745, 2
        %v1856 = vrot.slane %v1746, 2
        %v1857 = vsel %vm725, %v1855, %v1856
        %v1858 = vrot.slane %v1747, 2
        %v1859 = vsel %vm725, %v1856, %v1858
        %v1860 = vrot.slane %v1748, 2
        %v1861 = vrot.slane %v1749, 2
        %v1862 = vsel %vm725, %v1860, %v1861
        %v1863 = vrot.slane %v1750, 2
        %v1864 = vsel %vm725, %v1861, %v1863
        %v1865 = vrot.slane %v1751, 2
        %v1866 = vrot.slane %v1752, 2
        %v1867 = vsel %vm725, %v1865, %v1866
        %v1868 = vrot.slane %v1753, 2
        %v1869 = vsel %vm725, %v1866, %v1868
        %v1870 = vrot.slane %v1754, 2
        %v1871 = vrot.slane %v1755, 2
        %v1872 = vsel %vm725, %v1870, %v1871
        %v1873 = vrot.slane %v1756, 2
        %v1874 = vsel %vm725, %v1871, %v1873
        %v1875 = vrot.slane %v1757, 2
        %v1876 = vrot.slane %v1758, 2
        %v1877 = vsel %vm725, %v1875, %v1876
        %v1878 = vrot.slane %v1759, 2
        %v1879 = vsel %vm725, %v1876, %v1878
        %v1880 = vrot.slane %v1760, 2
        %v1881 = vrot.slane %v1761, 2
        %v1882 = vsel %vm725, %v1880, %v1881
        %v1883 = vrot.slane %v1762, 2
        %v1884 = vsel %vm725, %v1881, %v1883
        %v1885 = vrot.slane %v1763, 2
        %v1886 = vrot.slane %v1764, 2
        %v1887 = vsel %vm725, %v1885, %v1886
        %v1888 = vrot.slane %v1765, 2
        %v1889 = vsel %vm725, %v1886, %v1888
        %v1890 = vrot.slane %v1766, 2
        %v1891 = vrot.slane %v1767, 2
        %v1892 = vsel %vm725, %v1890, %v1891
        %v1893 = vrot.slane %v1768, 2
        %v1894 = vsel %vm725, %v1891, %v1893
        %v1895 = vrot.slane %v1769, 2
        %v1896 = vrot.slane %v1770, 2
        %v1897 = vsel %vm725, %v1895, %v1896
        %v1898 = vrot.slane %v1771, 2
        %v1899 = vsel %vm725, %v1896, %v1898
        %v1932 = vadd.f32 %v1691, %v1822
        %v1933 = vadd.f32 %v1692, %v1824
        %v1934 = vadd.f32 %v1693, %v1827
        %v1935 = vadd.f32 %v1694, %v1829
        %v1936 = vadd.f32 %v1695, %v1832
        %v1937 = vadd.f32 %v1696, %v1834
        %v1938 = vadd.f32 %v1697, %v1837
        %v1939 = vadd.f32 %v1698, %v1839
        %v1940 = vadd.f32 %v1699, %v1842
        %v1941 = vadd.f32 %v1700, %v1844
        %v1942 = vadd.f32 %v1701, %v1847
        %v1943 = vadd.f32 %v1702, %v1849
        %v1944 = vadd.f32 %v1703, %v1852
        %v1945 = vadd.f32 %v1704, %v1854
        %v1946 = vadd.f32 %v1705, %v1857
        %v1947 = vadd.f32 %v1706, %v1859
        %v1948 = vadd.f32 %v1707, %v1862
        %v1949 = vadd.f32 %v1708, %v1864
        %v1950 = vadd.f32 %v1709, %v1867
        %v1951 = vadd.f32 %v1710, %v1869
        %v1952 = vadd.f32 %v1711, %v1872
        %v1953 = vadd.f32 %v1712, %v1874
        %v1954 = vadd.f32 %v1713, %v1877
        %v1955 = vadd.f32 %v1714, %v1879
        %v1956 = vadd.f32 %v1715, %v1882
        %v1957 = vadd.f32 %v1716, %v1884
        %v1958 = vadd.f32 %v1717, %v1887
        %v1959 = vadd.f32 %v1718, %v1889
        %v1960 = vadd.f32 %v1719, %v1892
        %v1961 = vadd.f32 %v1720, %v1894
        %v1962 = vadd.f32 %v1721, %v1897
        %v1963 = vadd.f32 %v1722, %v1899
        %v1964 = vld [vmem:[%s2] sm:$0x1]
        %v1966 = vperm.slane %v1964, 0
        %v1968 = vadd.f32 %v1932, %v1966
        %v1969 = vadd.f32 %v1933, %v1966
        %v1970 = vadd.f32 %v1934, %v1966
        %v1971 = vadd.f32 %v1935, %v1966
        %v1972 = vadd.f32 %v1936, %v1966
        %v1973 = vadd.f32 %v1937, %v1966
        %v1974 = vadd.f32 %v1938, %v1966
        %v1975 = vadd.f32 %v1939, %v1966
        %v1976 = vadd.f32 %v1940, %v1966
        %v1977 = vadd.f32 %v1941, %v1966
        %v1978 = vadd.f32 %v1942, %v1966
        %v1979 = vadd.f32 %v1943, %v1966
        %v1980 = vadd.f32 %v1944, %v1966
        %v1981 = vadd.f32 %v1945, %v1966
        %v1982 = vadd.f32 %v1946, %v1966
        %v1983 = vadd.f32 %v1947, %v1966
        %v1984 = vadd.f32 %v1948, %v1966
        %v1985 = vadd.f32 %v1949, %v1966
        %v1986 = vadd.f32 %v1950, %v1966
        %v1987 = vadd.f32 %v1951, %v1966
        %v1988 = vadd.f32 %v1952, %v1966
        %v1989 = vadd.f32 %v1953, %v1966
        %v1990 = vadd.f32 %v1954, %v1966
        %v1991 = vadd.f32 %v1955, %v1966
        %v1992 = vadd.f32 %v1956, %v1966
        %v1993 = vadd.f32 %v1957, %v1966
        %v1994 = vadd.f32 %v1958, %v1966
        %v1995 = vadd.f32 %v1959, %v1966
        %v1996 = vadd.f32 %v1960, %v1966
        %v1997 = vadd.f32 %v1961, %v1966
        %v1998 = vadd.f32 %v1962, %v1966
        %v1999 = vadd.f32 %v1963, %v1966
        %v2000 = vmax.f32 %v1968, 0.0
        %v2001 = vmax.f32 %v1969, 0.0
        %v2002 = vmax.f32 %v1970, 0.0
        %v2003 = vmax.f32 %v1971, 0.0
        %v2004 = vmax.f32 %v1972, 0.0
        %v2005 = vmax.f32 %v1973, 0.0
        %v2006 = vmax.f32 %v1974, 0.0
        %v2007 = vmax.f32 %v1975, 0.0
        %v2008 = vmax.f32 %v1976, 0.0
        %v2009 = vmax.f32 %v1977, 0.0
        %v2010 = vmax.f32 %v1978, 0.0
        %v2011 = vmax.f32 %v1979, 0.0
        %v2012 = vmax.f32 %v1980, 0.0
        %v2013 = vmax.f32 %v1981, 0.0
        %v2014 = vmax.f32 %v1982, 0.0
        %v2015 = vmax.f32 %v1983, 0.0
        %v2016 = vmax.f32 %v1984, 0.0
        %v2017 = vmax.f32 %v1985, 0.0
        %v2018 = vmax.f32 %v1986, 0.0
        %v2019 = vmax.f32 %v1987, 0.0
        %v2020 = vmax.f32 %v1988, 0.0
        %v2021 = vmax.f32 %v1989, 0.0
        %v2022 = vmax.f32 %v1990, 0.0
        %v2023 = vmax.f32 %v1991, 0.0
        %v2024 = vmax.f32 %v1992, 0.0
        %v2025 = vmax.f32 %v1993, 0.0
        %v2026 = vmax.f32 %v1994, 0.0
        %v2027 = vmax.f32 %v1995, 0.0
        %v2028 = vmax.f32 %v1996, 0.0
        %v2029 = vmax.f32 %v1997, 0.0
        %v2030 = vmax.f32 %v1998, 0.0
        %v2031 = vmax.f32 %v1999, 0.0
        %v2032 = vpack.c.bf16 %v2001, %v2000
        %v2033 = vpack.c.bf16 %v2003, %v2002
        %v2034 = vpack.c.bf16 %v2005, %v2004
        %v2035 = vpack.c.bf16 %v2007, %v2006
        %v2036 = vpack.c.bf16 %v2009, %v2008
        %v2037 = vpack.c.bf16 %v2011, %v2010
        %v2038 = vpack.c.bf16 %v2013, %v2012
        %v2039 = vpack.c.bf16 %v2015, %v2014
        %v2040 = vpack.c.bf16 %v2017, %v2016
        %v2041 = vpack.c.bf16 %v2019, %v2018
        %v2042 = vpack.c.bf16 %v2021, %v2020
        %v2043 = vpack.c.bf16 %v2023, %v2022
        %v2044 = vpack.c.bf16 %v2025, %v2024
        %v2045 = vpack.c.bf16 %v2027, %v2026
        %v2046 = vpack.c.bf16 %v2029, %v2028
        %v2047 = vpack.c.bf16 %v2031, %v2030
        %v2048 = vld [vmem:[#allocation7] sm:$0xf]
        %v2049 = vld [vmem:[#allocation7 + $0x4] sm:$0xf]
        %v2050 = vld [vmem:[#allocation7 + $0x8] sm:$0xf]
        %v2051 = vld [vmem:[#allocation7 + $0xc] sm:$0xf]
        %v2052 = vld [vmem:[#allocation7 + $0x10] sm:$0xf]
        %v2053 = vld [vmem:[#allocation7 + $0x14] sm:$0xf]
        %v2054 = vld [vmem:[#allocation7 + $0x18] sm:$0xf]
        %v2055 = vld [vmem:[#allocation7 + $0x1c] sm:$0xf]
        %v2056 = vld [vmem:[#allocation7 + $0x20] sm:$0xf]
        %v2057 = vld [vmem:[#allocation7 + $0x24] sm:$0xf]
        %v2058 = vld [vmem:[#allocation7 + $0x28] sm:$0xf]
        %v2059 = vld [vmem:[#allocation7 + $0x2c] sm:$0xf]
        %v2060 = vld [vmem:[#allocation7 + $0x30] sm:$0xf]
        %v2061 = vld [vmem:[#allocation7 + $0x34] sm:$0xf]
        %v2062 = vld [vmem:[#allocation7 + $0x38] sm:$0xf]
        %v2063 = vld [vmem:[#allocation7 + $0x3c] sm:$0xf]
        %v2064 = vld [vmem:[%s4] sm:$0x1]
        %v2066 = vperm.slane %v2064, 0
        %v2084 = vunpack.c.l.b16 %v2048
        %v2085 = vunpack.c.l.b16 %v2049
        %v2086 = vunpack.c.l.b16 %v2050
        %v2087 = vunpack.c.l.b16 %v2051
        %v2088 = vunpack.c.l.b16 %v2052
        %v2089 = vunpack.c.l.b16 %v2053
        %v2090 = vunpack.c.l.b16 %v2054
        %v2091 = vunpack.c.l.b16 %v2055
        %v2092 = vunpack.c.l.b16 %v2056
        %v2093 = vunpack.c.l.b16 %v2057
        %v2094 = vunpack.c.l.b16 %v2058
        %v2095 = vunpack.c.l.b16 %v2059
        %v2096 = vunpack.c.l.b16 %v2060
        %v2097 = vunpack.c.l.b16 %v2061
        %v2098 = vunpack.c.l.b16 %v2062
        %v2099 = vunpack.c.l.b16 %v2063
        %v2100 = vpack.c.b16 %v2085, %v2084
        %v2101 = vpack.c.b16 %v2087, %v2086
        %v2102 = vpack.c.b16 %v2089, %v2088
        %v2103 = vpack.c.b16 %v2091, %v2090
        %v2104 = vpack.c.b16 %v2093, %v2092
        %v2105 = vpack.c.b16 %v2095, %v2094
        %v2106 = vpack.c.b16 %v2097, %v2096
        %v2107 = vpack.c.b16 %v2099, %v2098
        %2116 = vmatpush.bf16.msra.mxu0 %v2107
        %2117 = vmatpush.bf16.msra.mxu0 %v2106
        %2118 = vmatpush.bf16.msra.mxu0 %v2105
        %2119 = vmatpush.bf16.msra.mxu0 %v2104
        %2120 = vmatpush.bf16.msra.mxu0 %v2103
        %2121 = vmatpush.bf16.msra.mxu0 %v2102
        %2122 = vmatpush.bf16.msra.mxu0 %v2101
        %2123 = vmatpush.bf16.msra.mxu0 %v2100
        %2124 = vmatmul.bf16.gmra.mxu0 %v2032
        %v2125 = vpop.f32.mrf.mxu0
        %v2126 = vadd.f32 %v2066, %v2125
        %v2127 = vpop.f32.mrf.mxu0
        %v2128 = vadd.f32 %v2066, %v2127
        %2129 = vmatmul.bf16.gmra.mxu0 %v2033
        %v2130 = vpop.f32.mrf.mxu0
        %v2131 = vadd.f32 %v2066, %v2130
        %v2132 = vpop.f32.mrf.mxu0
        %v2133 = vadd.f32 %v2066, %v2132
        %2134 = vmatmul.bf16.gmra.mxu0 %v2034
        %v2135 = vpop.f32.mrf.mxu0
        %v2136 = vadd.f32 %v2066, %v2135
        %v2137 = vpop.f32.mrf.mxu0
        %v2138 = vadd.f32 %v2066, %v2137
        %2139 = vmatmul.bf16.gmra.mxu0 %v2035
        %v2140 = vpop.f32.mrf.mxu0
        %v2141 = vadd.f32 %v2066, %v2140
        %v2142 = vpop.f32.mrf.mxu0
        %v2143 = vadd.f32 %v2066, %v2142
        %2144 = vmatmul.bf16.gmra.mxu0 %v2036
        %v2145 = vpop.f32.mrf.mxu0
        %v2146 = vadd.f32 %v2066, %v2145
        %v2147 = vpop.f32.mrf.mxu0
        %v2148 = vadd.f32 %v2066, %v2147
        %2149 = vmatmul.bf16.gmra.mxu0 %v2037
        %v2150 = vpop.f32.mrf.mxu0
        %v2151 = vadd.f32 %v2066, %v2150
        %v2152 = vpop.f32.mrf.mxu0
        %v2153 = vadd.f32 %v2066, %v2152
        %2154 = vmatmul.bf16.gmra.mxu0 %v2038
        %v2155 = vpop.f32.mrf.mxu0
        %v2156 = vadd.f32 %v2066, %v2155
        %v2157 = vpop.f32.mrf.mxu0
        %v2158 = vadd.f32 %v2066, %v2157
        %2159 = vmatmul.bf16.gmra.mxu0 %v2039
        %v2160 = vpop.f32.mrf.mxu0
        %v2161 = vadd.f32 %v2066, %v2160
        %v2162 = vpop.f32.mrf.mxu0
        %v2163 = vadd.f32 %v2066, %v2162
        %2164 = vmatmul.bf16.gmra.mxu0 %v2040
        %v2165 = vpop.f32.mrf.mxu0
        %v2166 = vadd.f32 %v2066, %v2165
        %v2167 = vpop.f32.mrf.mxu0
        %v2168 = vadd.f32 %v2066, %v2167
        %2169 = vmatmul.bf16.gmra.mxu0 %v2041
        %v2170 = vpop.f32.mrf.mxu0
        %v2171 = vadd.f32 %v2066, %v2170
        %v2172 = vpop.f32.mrf.mxu0
        %v2173 = vadd.f32 %v2066, %v2172
        %2174 = vmatmul.bf16.gmra.mxu0 %v2042
        %v2175 = vpop.f32.mrf.mxu0
        %v2176 = vadd.f32 %v2066, %v2175
        %v2177 = vpop.f32.mrf.mxu0
        %v2178 = vadd.f32 %v2066, %v2177
        %2179 = vmatmul.bf16.gmra.mxu0 %v2043
        %v2180 = vpop.f32.mrf.mxu0
        %v2181 = vadd.f32 %v2066, %v2180
        %v2182 = vpop.f32.mrf.mxu0
        %v2183 = vadd.f32 %v2066, %v2182
        %2184 = vmatmul.bf16.gmra.mxu0 %v2044
        %v2185 = vpop.f32.mrf.mxu0
        %v2186 = vadd.f32 %v2066, %v2185
        %v2187 = vpop.f32.mrf.mxu0
        %v2188 = vadd.f32 %v2066, %v2187
        %2189 = vmatmul.bf16.gmra.mxu0 %v2045
        %v2190 = vpop.f32.mrf.mxu0
        %v2191 = vadd.f32 %v2066, %v2190
        %v2192 = vpop.f32.mrf.mxu0
        %v2193 = vadd.f32 %v2066, %v2192
        %2194 = vmatmul.bf16.gmra.mxu0 %v2046
        %v2195 = vpop.f32.mrf.mxu0
        %v2196 = vadd.f32 %v2066, %v2195
        %v2197 = vpop.f32.mrf.mxu0
        %v2198 = vadd.f32 %v2066, %v2197
        %2199 = vmatmul.bf16.gmra.mxu0 %v2047
        %v2200 = vpop.f32.mrf.mxu0
        %v2201 = vadd.f32 %v2066, %v2200
        %v2202 = vpop.f32.mrf.mxu0
        %v2203 = vadd.f32 %v2066, %v2202
        %2204 = vdwg.mxu0
        %v2205 = vmax.f32 %v2126, 0.0
        %v2206 = vmax.f32 %v2128, 0.0
        %v2207 = vmax.f32 %v2131, 0.0
        %v2208 = vmax.f32 %v2133, 0.0
        %v2209 = vmax.f32 %v2136, 0.0
        %v2210 = vmax.f32 %v2138, 0.0
        %v2211 = vmax.f32 %v2141, 0.0
        %v2212 = vmax.f32 %v2143, 0.0
        %v2213 = vmax.f32 %v2146, 0.0
        %v2214 = vmax.f32 %v2148, 0.0
        %v2215 = vmax.f32 %v2151, 0.0
        %v2216 = vmax.f32 %v2153, 0.0
        %v2217 = vmax.f32 %v2156, 0.0
        %v2218 = vmax.f32 %v2158, 0.0
        %v2219 = vmax.f32 %v2161, 0.0
        %v2220 = vmax.f32 %v2163, 0.0
        %v2221 = vmax.f32 %v2166, 0.0
        %v2222 = vmax.f32 %v2168, 0.0
        %v2223 = vmax.f32 %v2171, 0.0
        %v2224 = vmax.f32 %v2173, 0.0
        %v2225 = vmax.f32 %v2176, 0.0
        %v2226 = vmax.f32 %v2178, 0.0
        %v2227 = vmax.f32 %v2181, 0.0
        %v2228 = vmax.f32 %v2183, 0.0
        %v2229 = vmax.f32 %v2186, 0.0
        %v2230 = vmax.f32 %v2188, 0.0
        %v2231 = vmax.f32 %v2191, 0.0
        %v2232 = vmax.f32 %v2193, 0.0
        %v2233 = vmax.f32 %v2196, 0.0
        %v2234 = vmax.f32 %v2198, 0.0
        %v2235 = vmax.f32 %v2201, 0.0
        %v2236 = vmax.f32 %v2203, 0.0
        %2237 = vst [vmem:[%s291] sm:$0xff] %v2205
        %2238 = vst [vmem:[%s291 + $0x8] sm:$0xff] %v2206
        %2239 = vst [vmem:[%s291 + $0x10] sm:$0xff] %v2207
        %2240 = vst [vmem:[%s291 + $0x18] sm:$0xff] %v2208
        %2241 = vst [vmem:[%s291 + $0x20] sm:$0xff] %v2209
        %2242 = vst [vmem:[%s291 + $0x28] sm:$0xff] %v2210
        %2243 = vst [vmem:[%s291 + $0x30] sm:$0xff] %v2211
        %2244 = vst [vmem:[%s291 + $0x38] sm:$0xff] %v2212
        %2245 = vst [vmem:[%s291 + $0x40] sm:$0xff] %v2213
        %2246 = vst [vmem:[%s291 + $0x48] sm:$0xff] %v2214
        %2247 = vst [vmem:[%s291 + $0x50] sm:$0xff] %v2215
        %2248 = vst [vmem:[%s291 + $0x58] sm:$0xff] %v2216
        %2249 = vst [vmem:[%s291 + $0x60] sm:$0xff] %v2217
        %2250 = vst [vmem:[%s291 + $0x68] sm:$0xff] %v2218
        %2251 = vst [vmem:[%s291 + $0x70] sm:$0xff] %v2219
        %2252 = vst [vmem:[%s291 + $0x78] sm:$0xff] %v2220
        %2253 = vst [vmem:[%s291 + $0x80] sm:$0xff] %v2221
        %2254 = vst [vmem:[%s291 + $0x88] sm:$0xff] %v2222
        %2255 = vst [vmem:[%s291 + $0x90] sm:$0xff] %v2223
        %2256 = vst [vmem:[%s291 + $0x98] sm:$0xff] %v2224
        %2257 = vst [vmem:[%s291 + $0xa0] sm:$0xff] %v2225
        %2258 = vst [vmem:[%s291 + $0xa8] sm:$0xff] %v2226
        %2259 = vst [vmem:[%s291 + $0xb0] sm:$0xff] %v2227
        %2260 = vst [vmem:[%s291 + $0xb8] sm:$0xff] %v2228
        %2261 = vst [vmem:[%s291 + $0xc0] sm:$0xff] %v2229
        %2262 = vst [vmem:[%s291 + $0xc8] sm:$0xff] %v2230
        %2263 = vst [vmem:[%s291 + $0xd0] sm:$0xff] %v2231
        %2264 = vst [vmem:[%s291 + $0xd8] sm:$0xff] %v2232
        %2265 = vst [vmem:[%s291 + $0xe0] sm:$0xff] %v2233
        %2266 = vst [vmem:[%s291 + $0xe8] sm:$0xff] %v2234
        %2267 = vst [vmem:[%s291 + $0xf0] sm:$0xff] %v2235
        %2268 = vst [vmem:[%s291 + $0xf8] sm:$0xff] %v2236
        %s2269 = sand.u32 %s155, 1
        %s2270 = scalar_lea.sflag [#allocation4], %s2269
        %s2271 = sand.u32 %s155, 1
        %s2272 = smul.addr %s2271, 256
        %s2273 = scalar_lea.vmem [#allocation8], %s2272
        // Predicated region
        $region53: #{tpu_custom_call.1} parent=39 // pred_check
          %p2274 = pneg %p165
        $region54: #{tpu_custom_call.1} parent=39 // pred_check_branch
          %2276 = sbr.rel (%p2274) target = $region56
        $region55: #{tpu_custom_call.1} parent=39 // pred_region
          %s2277 = smul.u32 32, %s28
          %2279 = vsyncadd %s2270, 0
          %s2280 = smul.addr %s27, 32
          %s2281 = sadd.s32 %s2277, %s2280
          %s2282 = smul.addr %s2281, 8
          %s2283 = scalar_lea.hbm %s5, %s2282
          %s2284 = sshll.u32 %s2273, 4
          %s2285 = int_to_ptr.vmem [resolvable:$true] %s2284
          %s2286 = sshll.u32 %s2283, 4
          %s2287 = int_to_ptr.hbm [resolvable:$true] %s2286
          %2292 = dma.vmem_to_hbm [thread:$0]  %s2285, 4096, %s2287, %s2270, 128, 128, 8
        $region56: #{tpu_custom_call.1} parent=39 // pred_fallthru
          _
      $region40: #{tpu_custom_call.1} parent=5 // pred_fallthru
        _
      %p2293 = scmp.le.s32.totalorder 2, %s18
      // Predicated region
      $region57: #{tpu_custom_call.1} parent=5 // pred_check
        %p2294 = pneg %p2293
      $region58: #{tpu_custom_call.1} parent=5 // pred_check_branch
        %2296 = sbr.rel (%p2294) target = $region60
      $region59: #{tpu_custom_call.1} parent=5 // pred_region
        %s2297 = ssub.s32 %s18, 2
        // Predicated region
        $region61: #{tpu_custom_call.1} parent=59 // pred_check
          %p2298 = pneg %p171
        $region62: #{tpu_custom_call.1} parent=59 // pred_check_branch
          %2300 = sbr.rel (%p2298) target = $region64
        $region63: #{tpu_custom_call.1} parent=59 // pred_region
          %s2301 = sand.u32 %s156, 1
          %s2302 = scalar_lea.sflag [#allocation4], %s2301
          %s2303 = sand.u32 %s156, 1
          %s2304 = smul.addr %s2303, 256
          %s2305 = scalar_lea.vmem [#allocation8], %s2304
          %2307 = dma.done %s2302, 4096
        $region64: #{tpu_custom_call.1} parent=59 // pred_fallthru
          _
      $region60: #{tpu_custom_call.1} parent=5 // pred_fallthru
        _
    $region6: #{tpu_custom_call.1} parent=1 // loop_footer
      %s22 = sadd.s32 1, %s18
    $region7: #{tpu_custom_call.1} parent=1 // loop_footer_branch
      %17 = sbr.rel target = $region3
    $region8: #{tpu_custom_call.1} parent=1 // loop_exit
      _
    %2308 = vsyncpa [#allocation3], 1
    %s2309 = scalar_lea.sflag [#allocation3], 1
    %2310 = vsyncpa %s2309, 1
    %2311 = vsyncpa [#allocation6], 1
    %2312 = vsyncpa [#allocation4], 1
    %s2313 = scalar_lea.sflag [#allocation4], 1
    %2314 = vsyncpa %s2313, 1

</llo_original>
